<compile_context>
chip_gen: v6e
topology: v6e:2x2x1
jax: 0.10.0
libtpu: 0.0.40
codegen_flags: <defaults>
</compile_context>

<pallas_src>
import functools

import jax
import jax.numpy as jnp
from jax import lax
from jax.experimental import pallas as pl
from jax.experimental.pallas import tpu as pltpu

EPS = 1e-5
TARGET_BLOCK_BYTES = 1 << 20           # ~1 MiB of f32 activations per grid step
VMEM_LIMIT_BYTES = 32 * 1024 * 1024    # safe on v5e / v6e / v7x (64 MiB phys)


def _choose_tiles(N, C, L):
    """Batch tile TN chosen by bytes (~TARGET_BLOCK_BYTES of f32 activations),
    while keeping >= 2 grid steps whenever N >= 2 (both v7x TCs get work)."""
    per_sample = 4 * C * L
    tn_budget = max(1, TARGET_BLOCK_BYTES // per_sample)
    tn = max(1, min(tn_budget, -(-N // 2))) if N >= 2 else 1
    n_pad = -(-N // tn) * tn
    return tn, n_pad


# ----------------------------- kernel helpers --------------------------------

def _conv3(x_b, w_ref):
    """k=3 / stride=1 / pad=1 Conv1d on an (TN, C_in, L) block.

    Channel mixing commutes with the spatial shift, so each tap is a bf16
    batched MXU matmul on the *unshifted* input followed by a zero-padded
    shift of the f32 result along the lane (L) axis."""
    tn, _, L = x_b.shape
    c_out, c_in = w_ref.shape[1], w_ref.shape[2]

    def tap(k):
        wb = jnp.broadcast_to(w_ref[k][None], (tn, c_out, c_in))
        return jnp.einsum("noi,nil->nol", wb, x_b,
                          preferred_element_type=jnp.float32)

    t0, t1, t2 = tap(0), tap(1), tap(2)
    zcol = jnp.zeros_like(t1[:, :, :1])
    # out[l] = t0[l-1] + t1[l] + t2[l+1]   (zeros outside [0, L))
    return (jnp.concatenate([zcol, t0[:, :, :L - 1]], axis=2)
            + t1
            + jnp.concatenate([t2[:, :, 1:], zcol], axis=2))


def _partial_stats(y, mask_pad, tn, n_real):
    """Per-tile per-channel [sum, sumsq] of the f32 conv output -> (1, 2, C)."""
    s_nc = jnp.sum(y, axis=2)                 # (TN, C)  lane reduction
    q_nc = jnp.sum(y * y, axis=2)             # (TN, C)
    if mask_pad:
        # only real samples may contribute to the BatchNorm statistics
        gn = pl.program_id(0) * tn + lax.broadcasted_iota(
            jnp.int32, s_nc.shape, 0)
        keep = gn < n_real
        s_nc = jnp.where(keep, s_nc, 0.0)
        q_nc = jnp.where(keep, q_nc, 0.0)
    s = jnp.sum(s_nc, axis=0, keepdims=True)  # (1, C)  sublane reduction
    q = jnp.sum(q_nc, axis=0, keepdims=True)
    return jnp.concatenate([s, q], axis=0)[None]   # (1, 2, C), channels on lanes


# --------------------------------- kernels ------------------------------------

def _stats1_kernel(x_ref, w1_ref, st_ref):
    # conv1 only for its statistics; y1 is NOT written back to HBM.
    x = x_ref[...].astype(jnp.bfloat16)
    y1 = _conv3(x, w1_ref)                                   # (TN, C, L) f32
    # zero-padded fake samples contribute exactly zero -> no masking needed
    st_ref[...] = _partial_stats(y1, False, 0, 0)


def _bn1_conv2_kernel(x_ref, w1_ref, w2_ref, p1_ref, y2_ref, st_ref, *,
                      tn, n_real, mask_pad):
    x = x_ref[...].astype(jnp.bfloat16)
    y1 = _conv3(x, w1_ref)                                   # recomputed conv1
    # folded BN1 affine + relu, all in f32 (VPU math stays f32)
    h = jnp.maximum(y1 * p1_ref[0:1] + p1_ref[1:2], 0.0)
    y2 = _conv3(h.astype(jnp.bfloat16), w2_ref)              # f32 accumulator
    y2_ref[...] = y2.astype(jnp.bfloat16)                    # bf16 HBM traffic
    st_ref[...] = _partial_stats(y2, mask_pad, tn, n_real)   # stats from f32


def _bn2_out_kernel(*refs, shortcuts):
    if shortcuts:
        y2_ref, x_ref, p2_ref, o_ref = refs
    else:
        y2_ref, p2_ref, o_ref = refs
    z = y2_ref[...].astype(jnp.float32) * p2_ref[0:1] + p2_ref[1:2]
    if shortcuts:
        z = z + x_ref[...]                    # identity shortcut (equal shapes)
    o_ref[...] = jnp.maximum(z, 0.0).astype(o_ref.dtype)


# -------------------------------- wrapper -------------------------------------

def _fold_bn(stats, gamma, beta, count):
    """stats: (num_tiles, 2, C) partial [sum, sumsq] -> folded (scale, shift)."""
    s = jnp.sum(stats[:, 0, :], axis=0)
    q = jnp.sum(stats[:, 1, :], axis=0)
    mean = s / count
    var = jnp.maximum(q / count - mean * mean, 0.0)   # guard cancellation
    scale = gamma.astype(jnp.float32) * lax.rsqrt(var + EPS)
    shift = beta.astype(jnp.float32) - mean * scale
    return jnp.stack([scale, shift], axis=0)[:, :, None]     # (2, C, 1)


@functools.partial(jax.jit, static_argnames=("shortcuts",))
def res_block_forward(x, w1, w2, g1, b1, g2, b2, *, shortcuts=False):
    """x: (N, C, L); w1/w2: (C, C, 3) PyTorch Conv1d (O, I, K) layout."""
    N, C, L = x.shape
    tn, n_pad = _choose_tiles(N, C, L)
    num_tiles = n_pad // tn
    need_pad = n_pad != N

    xw = x.astype(jnp.float32)
    if need_pad:
        # zero samples: contribute 0 to BN1 sums; masked out of BN2 sums.
        xw = jnp.pad(xw, ((0, n_pad - N), (0, 0), (0, 0)))

    # Conv1d weights (C_out, C_in, 3) -> (3, C_out, C_in) bf16 MXU operands.
    w1t = jnp.transpose(w1.astype(jnp.float32), (2, 0, 1)).astype(jnp.bfloat16)
    w2t = jnp.transpose(w2.astype(jnp.float32), (2, 0, 1)).astype(jnp.bfloat16)

    act_spec = pl.BlockSpec((tn, C, L), lambda i: (i, 0, 0))
    w_spec = pl.BlockSpec((3, C, C), lambda i: (0, 0, 0))
    p_spec = pl.BlockSpec((2, C, 1), lambda i: (0, 0, 0))
    st_spec = pl.BlockSpec((1, 2, C), lambda i: (i, 0, 0))
    st_shape = jax.ShapeDtypeStruct((num_tiles, 2, C), jnp.float32)
    cparams = pltpu.CompilerParams(dimension_semantics=("parallel",),
                                   vmem_limit_bytes=VMEM_LIMIT_BYTES)

    act_f32_bytes = 4 * n_pad * C * L
    conv_flops = 2 * 3 * C * C * n_pad * L
    count = float(N * L)                     # real (unpadded) elements / channel

    # --- pass 1: conv1 -> per-tile BN1 partial sums (no y1 round-trip) -------
    st1 = pl.pallas_call(
        _stats1_kernel,
        out_shape=st_shape,
        grid=(num_tiles,),
        in_specs=[act_spec, w_spec],
        out_specs=st_spec,
        compiler_params=cparams,
        cost_estimate=pl.CostEstimate(flops=conv_flops, transcendentals=0,
                                      bytes_accessed=act_f32_bytes),
    )(xw, w1t)
    p1 = _fold_bn(st1, g1, b1, count)

    # --- pass 2: conv1 (recompute) + BN1 + relu + conv2 -> bf16 y2 + stats ---
    y2, st2 = pl.pallas_call(
        functools.partial(_bn1_conv2_kernel, tn=tn, n_real=N,
                          mask_pad=need_pad),
        out_shape=(jax.ShapeDtypeStruct((n_pad, C, L), jnp.bfloat16), st_shape),
        grid=(num_tiles,),
        in_specs=[act_spec, w_spec, w_spec, p_spec],
        out_specs=(act_spec, st_spec),
        compiler_params=cparams,
        cost_estimate=pl.CostEstimate(
            flops=2 * conv_flops, transcendentals=0,
            bytes_accessed=act_f32_bytes + act_f32_bytes // 2),
    )(xw, w1t, w2t, p1)
    p2 = _fold_bn(st2, g2, b2, count)

    # --- pass 3: BN2 (+ identity shortcut) + relu, straight to NCL output ----
    if shortcuts:
        kern = functools.partial(_bn2_out_kernel, shortcuts=True)
        in_specs = [act_spec, act_spec, p_spec]
        args = (y2, xw, p2)
        p3_bytes = act_f32_bytes // 2 + 2 * act_f32_bytes
    else:
        # do not DMA x at all when the shortcut is disabled
        kern = functools.partial(_bn2_out_kernel, shortcuts=False)
        in_specs = [act_spec, p_spec]
        args = (y2, p2)
        p3_bytes = act_f32_bytes // 2 + act_f32_bytes
    out_pad = pl.pallas_call(
        kern,
        out_shape=jax.ShapeDtypeStruct((n_pad, C, L), x.dtype),
        grid=(num_tiles,),
        in_specs=in_specs,
        out_specs=act_spec,
        compiler_params=cparams,
        cost_estimate=pl.CostEstimate(flops=4 * n_pad * C * L, transcendentals=0,
                                      bytes_accessed=p3_bytes),
    )(*args)

    # padded fake samples carry garbage by design; crop them here.
    return out_pad[:N] if need_pad else out_pad


# ------------------------------ pure-JAX reference ----------------------------

def _ref_forward(x, w1, w2, g1, b1, g2, b2, shortcuts):
    def conv(a, w):
        return lax.conv_general_dilated(
            a, w, window_strides=(1,), padding=((1, 1),),
            dimension_numbers=("NCH", "OIH", "NCH"))

    def bn(z, g, b):
        mean = jnp.mean(z, axis=(0, 2), keepdims=True)
        var = jnp.mean((z - mean) ** 2, axis=(0, 2), keepdims=True)
        zn = (z - mean) / jnp.sqrt(var + EPS)
        return zn * g.reshape(1, -1, 1) + b.reshape(1, -1, 1)

    z = jax.nn.relu(bn(conv(x, w1), g1, b1))
    z = bn(conv(z, w2), g2, b2)
    if shortcuts:
        z = z + x
    return jax.nn.relu(z)


if __name__ == "__main__":
    key = jax.random.PRNGKey(0)

    # (N, C, L, shortcuts): tiny case (both shortcut settings) plus a case that
    # exercises multiple grid tiles AND batch padding (N=5 -> padded to 6).
    cases = ((2, 4, 16, False), (2, 4, 16, True), (5, 8, 128, True))
    for (N, C, L, sc) in cases:
        key, k1, k2, k3 = jax.random.split(key, 4)
        x = jax.random.normal(k1, (N, C, L), jnp.float32)
        std = (2.0 / (C * 3)) ** 0.5          # kaiming_normal_, fan_out, relu
        w1 = jax.random.normal(k2, (C, C, 3), jnp.float32) * std
        w2 = jax.random.normal(k3, (C, C, 3), jnp.float32) * std
        g1 = jnp.ones((C,), jnp.float32)
        b1 = jnp.zeros((C,), jnp.float32)
        g2 = jnp.ones((C,), jnp.float32)
        b2 = jnp.zeros((C,), jnp.float32)

        out = jax.block_until_ready(
            res_block_forward(x, w1, w2, g1, b1, g2, b2, shortcuts=sc))
        ref = _ref_forward(x, w1, w2, g1, b1, g2, b2, sc)
        assert out.shape == (N, C, L)
        # bf16 intermediates / bf16 MXU operands (per perf review) => a few e-3
        # of drift vs. the f32 reference is expected.
        err = float(jnp.max(jnp.abs(out - ref)))
        assert jnp.allclose(out, ref, atol=5e-2, rtol=5e-2), \
            f"mismatch vs reference (N={N}, C={C}, L={L}, sc={sc}, max_err={err})"

    print("KERNEL_OK")
</pallas_src>

<mosaic_0001>
module attributes {stable_mosaic.version = 11 : i64} {
  func.func @_stats1_kernel(%arg0: i32, %arg1: memref<1x4x16xf32, #tpu.memory_space<vmem>>, %arg2: memref<3x4x4xbf16, #tpu.memory_space<vmem>>, %arg3: memref<1x2x4xf32, #tpu.memory_space<vmem>>) attributes {dimension_semantics = [#tpu.dimension_semantics<parallel>], iteration_bounds = array<i64: 2>, scalar_prefetch = 0 : i64, scratch_operands = 0 : i64, tpu.core_type = #tpu.core_type<tc>, window_params = [{transform_indices = @transform_0, window_bounds = array<i64: 1, 4, 16>}, {pipeline_mode = #tpu.pipeline_mode<synchronous>, transform_indices = @transform_1, window_bounds = array<i64: 3, 4, 4>}, {transform_indices = @transform_2, window_bounds = array<i64: 1, 2, 4>}]} {
    %c0 = arith.constant 0 : index
    %c0_0 = arith.constant 0 : index
    %c0_1 = arith.constant 0 : index
    %0 = vector.load %arg1[%c0, %c0_0, %c0_1] : memref<1x4x16xf32, #tpu.memory_space<vmem>>, vector<1x4x16xf32>
    %1 = arith.truncf %0 : vector<1x4x16xf32> to vector<1x4x16xbf16>
    %c0_2 = arith.constant 0 : index
    %c0_3 = arith.constant 0 : index
    %c0_4 = arith.constant 0 : index
    %2 = vector.load %arg2[%c0_2, %c0_3, %c0_4] : memref<3x4x4xbf16, #tpu.memory_space<vmem>>, vector<1x4x4xbf16>
    %3 = vector.shape_cast %2 : vector<1x4x4xbf16> to vector<4x4xbf16>
    %4 = vector.shape_cast %3 : vector<4x4xbf16> to vector<1x4x4xbf16>
    "tpu.trace_start"() <{level = 10 : i32, message = "noi,nil->nol"}> : () -> ()
    %cst = arith.constant dense<0.000000e+00> : vector<1x4x16xf32>
    %5 = tpu.matmul %4, %1, %cst {dimension_numbers = #tpu.dot_dimension_numbers<[2], [1], [1], [2], [0, 0, 0, 1, 1, 2], [0], [0]>} : vector<1x4x4xbf16>, vector<1x4x16xbf16>, vector<1x4x16xf32> -> vector<1x4x16xf32>
    "tpu.trace_stop"() : () -> ()
    %c1 = arith.constant 1 : index
    %c0_5 = arith.constant 0 : index
    %c0_6 = arith.constant 0 : index
    %6 = vector.load %arg2[%c1, %c0_5, %c0_6] : memref<3x4x4xbf16, #tpu.memory_space<vmem>>, vector<1x4x4xbf16>
    %7 = vector.shape_cast %6 : vector<1x4x4xbf16> to vector<4x4xbf16>
    %8 = vector.shape_cast %7 : vector<4x4xbf16> to vector<1x4x4xbf16>
    "tpu.trace_start"() <{level = 10 : i32, message = "noi,nil->nol"}> : () -> ()
    %cst_7 = arith.constant dense<0.000000e+00> : vector<1x4x16xf32>
    %9 = tpu.matmul %8, %1, %cst_7 {dimension_numbers = #tpu.dot_dimension_numbers<[2], [1], [1], [2], [0, 0, 0, 1, 1, 2], [0], [0]>} : vector<1x4x4xbf16>, vector<1x4x16xbf16>, vector<1x4x16xf32> -> vector<1x4x16xf32>
    "tpu.trace_stop"() : () -> ()
    %c2 = arith.constant 2 : index
    %c0_8 = arith.constant 0 : index
    %c0_9 = arith.constant 0 : index
    %10 = vector.load %arg2[%c2, %c0_8, %c0_9] : memref<3x4x4xbf16, #tpu.memory_space<vmem>>, vector<1x4x4xbf16>
    %11 = vector.shape_cast %10 : vector<1x4x4xbf16> to vector<4x4xbf16>
    %12 = vector.shape_cast %11 : vector<4x4xbf16> to vector<1x4x4xbf16>
    "tpu.trace_start"() <{level = 10 : i32, message = "noi,nil->nol"}> : () -> ()
    %cst_10 = arith.constant dense<0.000000e+00> : vector<1x4x16xf32>
    %13 = tpu.matmul %12, %1, %cst_10 {dimension_numbers = #tpu.dot_dimension_numbers<[2], [1], [1], [2], [0, 0, 0, 1, 1, 2], [0], [0]>} : vector<1x4x4xbf16>, vector<1x4x16xbf16>, vector<1x4x16xf32> -> vector<1x4x16xf32>
    %cst_11 = arith.constant 0.000000e+00 : f32
    "tpu.trace_stop"() : () -> ()
    %14 = vector.broadcast %cst_11 : f32 to vector<1x4x1xf32>
    %15 = vector.extract_strided_slice %5 {offsets = [0, 0, 0], sizes = [1, 4, 15], strides = [1, 1, 1]} : vector<1x4x16xf32> to vector<1x4x15xf32>
    %16 = tpu.concatenate %14, %15 in 2 : vector<1x4x1xf32>, vector<1x4x15xf32> -> vector<1x4x16xf32>
    %17 = arith.addf %16, %9 : vector<1x4x16xf32>
    %18 = vector.extract_strided_slice %13 {offsets = [0, 0, 1], sizes = [1, 4, 15], strides = [1, 1, 1]} : vector<1x4x16xf32> to vector<1x4x15xf32>
    %19 = tpu.concatenate %18, %14 in 2 : vector<1x4x15xf32>, vector<1x4x1xf32> -> vector<1x4x16xf32>
    %20 = arith.addf %17, %19 : vector<1x4x16xf32>
    %cst_12 = arith.constant dense<0.000000e+00> : vector<1x4xf32>
    %21 = vector.multi_reduction <add>, %20, %cst_12 [2] : vector<1x4x16xf32> to vector<1x4xf32>
    %22 = arith.mulf %20, %20 : vector<1x4x16xf32>
    %cst_13 = arith.constant dense<0.000000e+00> : vector<1x4xf32>
    %23 = vector.multi_reduction <add>, %22, %cst_13 [2] : vector<1x4x16xf32> to vector<1x4xf32>
    %cst_14 = arith.constant dense<0.000000e+00> : vector<4xf32>
    %24 = vector.multi_reduction <add>, %21, %cst_14 [0] : vector<1x4xf32> to vector<4xf32>
    %25 = vector.shape_cast %24 : vector<4xf32> to vector<1x4xf32>
    %cst_15 = arith.constant dense<0.000000e+00> : vector<4xf32>
    %26 = vector.multi_reduction <add>, %23, %cst_15 [0] : vector<1x4xf32> to vector<4xf32>
    %27 = vector.shape_cast %26 : vector<4xf32> to vector<1x4xf32>
    %28 = tpu.concatenate %25, %27 in 0 : vector<1x4xf32>, vector<1x4xf32> -> vector<2x4xf32>
    %29 = vector.shape_cast %28 : vector<2x4xf32> to vector<1x2x4xf32>
    %c0_16 = arith.constant 0 : index
    %c0_17 = arith.constant 0 : index
    %c0_18 = arith.constant 0 : index
    %30 = vector.load %arg3[%c0_16, %c0_17, %c0_18] : memref<1x2x4xf32, #tpu.memory_space<vmem>>, vector<1x2x4xf32>
    tpu.vector_store %arg3[%c0_16, %c0_17, %c0_18], %29 {strides = array<i32>} : memref<1x2x4xf32, #tpu.memory_space<vmem>>, vector<1x2x4xf32>,
    return
  }
  func.func @transform_0(%arg0: i32) -> (i32, i32, i32) {
    %c0_i32 = arith.constant 0 : i32
    %c0_i32_0 = arith.constant 0 : i32
    %c0_i32_1 = arith.constant 0 : i32
    return %arg0, %c0_i32, %c0_i32_0 : i32, i32, i32
  }
  func.func @transform_1(%arg0: i32) -> (i32, i32, i32) {
    %c0_i32 = arith.constant 0 : i32
    %c0_i32_0 = arith.constant 0 : i32
    %c0_i32_1 = arith.constant 0 : i32
    %c0_i32_2 = arith.constant 0 : i32
    return %c0_i32, %c0_i32_0, %c0_i32_1 : i32, i32, i32
  }
  func.func @transform_2(%arg0: i32) -> (i32, i32, i32) {
    %c0_i32 = arith.constant 0 : i32
    %c0_i32_0 = arith.constant 0 : i32
    %c0_i32_1 = arith.constant 0 : i32
    return %arg0, %c0_i32, %c0_i32_0 : i32, i32, i32
  }
}

module attributes {stable_mosaic.version = 11 : i64} {
  func.func @_bn2_out_kernel(%arg0: i32, %arg1: memref<1x4x16xbf16, #tpu.memory_space<vmem>>, %arg2: memref<2x4x1xf32, #tpu.memory_space<vmem>>, %arg3: memref<1x4x16xf32, #tpu.memory_space<vmem>>) attributes {dimension_semantics = [#tpu.dimension_semantics<parallel>], iteration_bounds = array<i64: 2>, scalar_prefetch = 0 : i64, scratch_operands = 0 : i64, tpu.core_type = #tpu.core_type<tc>, window_params = [{transform_indices = @transform_0, window_bounds = array<i64: 1, 4, 16>}, {pipeline_mode = #tpu.pipeline_mode<synchronous>, transform_indices = @transform_1, window_bounds = array<i64: 2, 4, 1>}, {transform_indices = @transform_2, window_bounds = array<i64: 1, 4, 16>}]} {
    %c0 = arith.constant 0 : index
    %c0_0 = arith.constant 0 : index
    %c0_1 = arith.constant 0 : index
    %0 = vector.load %arg1[%c0, %c0_0, %c0_1] : memref<1x4x16xbf16, #tpu.memory_space<vmem>>, vector<1x4x16xbf16>
    %1 = arith.extf %0 : vector<1x4x16xbf16> to vector<1x4x16xf32>
    %c0_2 = arith.constant 0 : index
    %c0_3 = arith.constant 0 : index
    %c0_4 = arith.constant 0 : index
    %2 = vector.load %arg2[%c0_2, %c0_3, %c0_4] : memref<2x4x1xf32, #tpu.memory_space<vmem>>, vector<1x4x1xf32>
    %3 = vector.broadcast %2 : vector<1x4x1xf32> to vector<1x4x16xf32>
    %4 = arith.mulf %1, %3 : vector<1x4x16xf32>
    %c1 = arith.constant 1 : index
    %c0_5 = arith.constant 0 : index
    %c0_6 = arith.constant 0 : index
    %5 = vector.load %arg2[%c1, %c0_5, %c0_6] : memref<2x4x1xf32, #tpu.memory_space<vmem>>, vector<1x4x1xf32>
    %6 = vector.broadcast %5 : vector<1x4x1xf32> to vector<1x4x16xf32>
    %7 = arith.addf %4, %6 : vector<1x4x16xf32>
    %cst = arith.constant 0.000000e+00 : f32
    %8 = vector.broadcast %cst : f32 to vector<1x4x16xf32>
    %9 = arith.maximumf %7, %8 : vector<1x4x16xf32>
    %c0_7 = arith.constant 0 : index
    %c0_8 = arith.constant 0 : index
    %c0_9 = arith.constant 0 : index
    %10 = vector.load %arg3[%c0_7, %c0_8, %c0_9] : memref<1x4x16xf32, #tpu.memory_space<vmem>>, vector<1x4x16xf32>
    tpu.vector_store %arg3[%c0_7, %c0_8, %c0_9], %9 {strides = array<i32>} : memref<1x4x16xf32, #tpu.memory_space<vmem>>, vector<1x4x16xf32>,
    return
  }
  func.func @transform_0(%arg0: i32) -> (i32, i32, i32) {
    %c0_i32 = arith.constant 0 : i32
    %c0_i32_0 = arith.constant 0 : i32
    %c0_i32_1 = arith.constant 0 : i32
    return %arg0, %c0_i32, %c0_i32_0 : i32, i32, i32
  }
  func.func @transform_1(%arg0: i32) -> (i32, i32, i32) {
    %c0_i32 = arith.constant 0 : i32
    %c0_i32_0 = arith.constant 0 : i32
    %c0_i32_1 = arith.constant 0 : i32
    %c0_i32_2 = arith.constant 0 : i32
    return %c0_i32, %c0_i32_0, %c0_i32_1 : i32, i32, i32
  }
  func.func @transform_2(%arg0: i32) -> (i32, i32, i32) {
    %c0_i32 = arith.constant 0 : i32
    %c0_i32_0 = arith.constant 0 : i32
    %c0_i32_1 = arith.constant 0 : i32
    return %arg0, %c0_i32, %c0_i32_0 : i32, i32, i32
  }
}

module attributes {stable_mosaic.version = 11 : i64} {
  func.func @_bn1_conv2_kernel(%arg0: i32, %arg1: memref<1x4x16xf32, #tpu.memory_space<vmem>>, %arg2: memref<3x4x4xbf16, #tpu.memory_space<vmem>>, %arg3: memref<3x4x4xbf16, #tpu.memory_space<vmem>>, %arg4: memref<2x4x1xf32, #tpu.memory_space<vmem>>, %arg5: memref<1x4x16xbf16, #tpu.memory_space<vmem>>, %arg6: memref<1x2x4xf32, #tpu.memory_space<vmem>>) attributes {dimension_semantics = [#tpu.dimension_semantics<parallel>], iteration_bounds = array<i64: 2>, scalar_prefetch = 0 : i64, scratch_operands = 0 : i64, tpu.core_type = #tpu.core_type<tc>, window_params = [{transform_indices = @transform_0, window_bounds = array<i64: 1, 4, 16>}, {pipeline_mode = #tpu.pipeline_mode<synchronous>, transform_indices = @transform_1, window_bounds = array<i64: 3, 4, 4>}, {pipeline_mode = #tpu.pipeline_mode<synchronous>, transform_indices = @transform_2, window_bounds = array<i64: 3, 4, 4>}, {pipeline_mode = #tpu.pipeline_mode<synchronous>, transform_indices = @transform_3, window_bounds = array<i64: 2, 4, 1>}, {transform_indices = @transform_4, window_bounds = array<i64: 1, 4, 16>}, {transform_indices = @transform_5, window_bounds = array<i64: 1, 2, 4>}]} {
    %c0 = arith.constant 0 : index
    %c0_0 = arith.constant 0 : index
    %c0_1 = arith.constant 0 : index
    %0 = vector.load %arg1[%c0, %c0_0, %c0_1] : memref<1x4x16xf32, #tpu.memory_space<vmem>>, vector<1x4x16xf32>
    %1 = arith.truncf %0 : vector<1x4x16xf32> to vector<1x4x16xbf16>
    %c0_2 = arith.constant 0 : index
    %c0_3 = arith.constant 0 : index
    %c0_4 = arith.constant 0 : index
    %2 = vector.load %arg2[%c0_2, %c0_3, %c0_4] : memref<3x4x4xbf16, #tpu.memory_space<vmem>>, vector<1x4x4xbf16>
    %3 = vector.shape_cast %2 : vector<1x4x4xbf16> to vector<4x4xbf16>
    %4 = vector.shape_cast %3 : vector<4x4xbf16> to vector<1x4x4xbf16>
    "tpu.trace_start"() <{level = 10 : i32, message = "noi,nil->nol"}> : () -> ()
    %cst = arith.constant dense<0.000000e+00> : vector<1x4x16xf32>
    %5 = tpu.matmul %4, %1, %cst {dimension_numbers = #tpu.dot_dimension_numbers<[2], [1], [1], [2], [0, 0, 0, 1, 1, 2], [0], [0]>} : vector<1x4x4xbf16>, vector<1x4x16xbf16>, vector<1x4x16xf32> -> vector<1x4x16xf32>
    "tpu.trace_stop"() : () -> ()
    %c1 = arith.constant 1 : index
    %c0_5 = arith.constant 0 : index
    %c0_6 = arith.constant 0 : index
    %6 = vector.load %arg2[%c1, %c0_5, %c0_6] : memref<3x4x4xbf16, #tpu.memory_space<vmem>>, vector<1x4x4xbf16>
    %7 = vector.shape_cast %6 : vector<1x4x4xbf16> to vector<4x4xbf16>
    %8 = vector.shape_cast %7 : vector<4x4xbf16> to vector<1x4x4xbf16>
    "tpu.trace_start"() <{level = 10 : i32, message = "noi,nil->nol"}> : () -> ()
    %cst_7 = arith.constant dense<0.000000e+00> : vector<1x4x16xf32>
    %9 = tpu.matmul %8, %1, %cst_7 {dimension_numbers = #tpu.dot_dimension_numbers<[2], [1], [1], [2], [0, 0, 0, 1, 1, 2], [0], [0]>} : vector<1x4x4xbf16>, vector<1x4x16xbf16>, vector<1x4x16xf32> -> vector<1x4x16xf32>
    "tpu.trace_stop"() : () -> ()
    %c2 = arith.constant 2 : index
    %c0_8 = arith.constant 0 : index
    %c0_9 = arith.constant 0 : index
    %10 = vector.load %arg2[%c2, %c0_8, %c0_9] : memref<3x4x4xbf16, #tpu.memory_space<vmem>>, vector<1x4x4xbf16>
    %11 = vector.shape_cast %10 : vector<1x4x4xbf16> to vector<4x4xbf16>
    %12 = vector.shape_cast %11 : vector<4x4xbf16> to vector<1x4x4xbf16>
    "tpu.trace_start"() <{level = 10 : i32, message = "noi,nil->nol"}> : () -> ()
    %cst_10 = arith.constant dense<0.000000e+00> : vector<1x4x16xf32>
    %13 = tpu.matmul %12, %1, %cst_10 {dimension_numbers = #tpu.dot_dimension_numbers<[2], [1], [1], [2], [0, 0, 0, 1, 1, 2], [0], [0]>} : vector<1x4x4xbf16>, vector<1x4x16xbf16>, vector<1x4x16xf32> -> vector<1x4x16xf32>
    %cst_11 = arith.constant 0.000000e+00 : f32
    "tpu.trace_stop"() : () -> ()
    %14 = vector.broadcast %cst_11 : f32 to vector<1x4x1xf32>
    %15 = vector.extract_strided_slice %5 {offsets = [0, 0, 0], sizes = [1, 4, 15], strides = [1, 1, 1]} : vector<1x4x16xf32> to vector<1x4x15xf32>
    %16 = tpu.concatenate %14, %15 in 2 : vector<1x4x1xf32>, vector<1x4x15xf32> -> vector<1x4x16xf32>
    %17 = arith.addf %16, %9 : vector<1x4x16xf32>
    %18 = vector.extract_strided_slice %13 {offsets = [0, 0, 1], sizes = [1, 4, 15], strides = [1, 1, 1]} : vector<1x4x16xf32> to vector<1x4x15xf32>
    %19 = tpu.concatenate %18, %14 in 2 : vector<1x4x15xf32>, vector<1x4x1xf32> -> vector<1x4x16xf32>
    %20 = arith.addf %17, %19 : vector<1x4x16xf32>
    %c0_12 = arith.constant 0 : index
    %c0_13 = arith.constant 0 : index
    %c0_14 = arith.constant 0 : index
    %21 = vector.load %arg4[%c0_12, %c0_13, %c0_14] : memref<2x4x1xf32, #tpu.memory_space<vmem>>, vector<1x4x1xf32>
    %22 = vector.broadcast %21 : vector<1x4x1xf32> to vector<1x4x16xf32>
    %23 = arith.mulf %20, %22 : vector<1x4x16xf32>
    %c1_15 = arith.constant 1 : index
    %c0_16 = arith.constant 0 : index
    %c0_17 = arith.constant 0 : index
    %24 = vector.load %arg4[%c1_15, %c0_16, %c0_17] : memref<2x4x1xf32, #tpu.memory_space<vmem>>, vector<1x4x1xf32>
    %25 = vector.broadcast %24 : vector<1x4x1xf32> to vector<1x4x16xf32>
    %26 = arith.addf %23, %25 : vector<1x4x16xf32>
    %cst_18 = arith.constant 0.000000e+00 : f32
    %27 = vector.broadcast %cst_18 : f32 to vector<1x4x16xf32>
    %28 = arith.maximumf %26, %27 : vector<1x4x16xf32>
    %29 = arith.truncf %28 : vector<1x4x16xf32> to vector<1x4x16xbf16>
    %c0_19 = arith.constant 0 : index
    %c0_20 = arith.constant 0 : index
    %c0_21 = arith.constant 0 : index
    %30 = vector.load %arg3[%c0_19, %c0_20, %c0_21] : memref<3x4x4xbf16, #tpu.memory_space<vmem>>, vector<1x4x4xbf16>
    %31 = vector.shape_cast %30 : vector<1x4x4xbf16> to vector<4x4xbf16>
    %32 = vector.shape_cast %31 : vector<4x4xbf16> to vector<1x4x4xbf16>
    "tpu.trace_start"() <{level = 10 : i32, message = "noi,nil->nol"}> : () -> ()
    %cst_22 = arith.constant dense<0.000000e+00> : vector<1x4x16xf32>
    %33 = tpu.matmul %32, %29, %cst_22 {dimension_numbers = #tpu.dot_dimension_numbers<[2], [1], [1], [2], [0, 0, 0, 1, 1, 2], [0], [0]>} : vector<1x4x4xbf16>, vector<1x4x16xbf16>, vector<1x4x16xf32> -> vector<1x4x16xf32>
    "tpu.trace_stop"() : () -> ()
    %c1_23 = arith.constant 1 : index
    %c0_24 = arith.constant 0 : index
    %c0_25 = arith.constant 0 : index
    %34 = vector.load %arg3[%c1_23, %c0_24, %c0_25] : memref<3x4x4xbf16, #tpu.memory_space<vmem>>, vector<1x4x4xbf16>
    %35 = vector.shape_cast %34 : vector<1x4x4xbf16> to vector<4x4xbf16>
    %36 = vector.shape_cast %35 : vector<4x4xbf16> to vector<1x4x4xbf16>
    "tpu.trace_start"() <{level = 10 : i32, message = "noi,nil->nol"}> : () -> ()
    %cst_26 = arith.constant dense<0.000000e+00> : vector<1x4x16xf32>
    %37 = tpu.matmul %36, %29, %cst_26 {dimension_numbers = #tpu.dot_dimension_numbers<[2], [1], [1], [2], [0, 0, 0, 1, 1, 2], [0], [0]>} : vector<1x4x4xbf16>, vector<1x4x16xbf16>, vector<1x4x16xf32> -> vector<1x4x16xf32>
    "tpu.trace_stop"() : () -> ()
    %c2_27 = arith.constant 2 : index
    %c0_28 = arith.constant 0 : index
    %c0_29 = arith.constant 0 : index
    %38 = vector.load %arg3[%c2_27, %c0_28, %c0_29] : memref<3x4x4xbf16, #tpu.memory_space<vmem>>, vector<1x4x4xbf16>
    %39 = vector.shape_cast %38 : vector<1x4x4xbf16> to vector<4x4xbf16>
    %40 = vector.shape_cast %39 : vector<4x4xbf16> to vector<1x4x4xbf16>
    "tpu.trace_start"() <{level = 10 : i32, message = "noi,nil->nol"}> : () -> ()
    %cst_30 = arith.constant dense<0.000000e+00> : vector<1x4x16xf32>
    %41 = tpu.matmul %40, %29, %cst_30 {dimension_numbers = #tpu.dot_dimension_numbers<[2], [1], [1], [2], [0, 0, 0, 1, 1, 2], [0], [0]>} : vector<1x4x4xbf16>, vector<1x4x16xbf16>, vector<1x4x16xf32> -> vector<1x4x16xf32>
    %cst_31 = arith.constant 0.000000e+00 : f32
    "tpu.trace_stop"() : () -> ()
    %42 = vector.broadcast %cst_31 : f32 to vector<1x4x1xf32>
    %43 = vector.extract_strided_slice %33 {offsets = [0, 0, 0], sizes = [1, 4, 15], strides = [1, 1, 1]} : vector<1x4x16xf32> to vector<1x4x15xf32>
    %44 = tpu.concatenate %42, %43 in 2 : vector<1x4x1xf32>, vector<1x4x15xf32> -> vector<1x4x16xf32>
    %45 = arith.addf %44, %37 : vector<1x4x16xf32>
    %46 = vector.extract_strided_slice %41 {offsets = [0, 0, 1], sizes = [1, 4, 15], strides = [1, 1, 1]} : vector<1x4x16xf32> to vector<1x4x15xf32>
    %47 = tpu.concatenate %46, %42 in 2 : vector<1x4x15xf32>, vector<1x4x1xf32> -> vector<1x4x16xf32>
    %48 = arith.addf %45, %47 : vector<1x4x16xf32>
    %49 = arith.truncf %48 : vector<1x4x16xf32> to vector<1x4x16xbf16>
    %c0_32 = arith.constant 0 : index
    %c0_33 = arith.constant 0 : index
    %c0_34 = arith.constant 0 : index
    %50 = vector.load %arg5[%c0_32, %c0_33, %c0_34] : memref<1x4x16xbf16, #tpu.memory_space<vmem>>, vector<1x4x16xbf16>
    tpu.vector_store %arg5[%c0_32, %c0_33, %c0_34], %49 {strides = array<i32>} : memref<1x4x16xbf16, #tpu.memory_space<vmem>>, vector<1x4x16xbf16>,
    %cst_35 = arith.constant dense<0.000000e+00> : vector<1x4xf32>
    %51 = vector.multi_reduction <add>, %48, %cst_35 [2] : vector<1x4x16xf32> to vector<1x4xf32>
    %52 = arith.mulf %48, %48 : vector<1x4x16xf32>
    %cst_36 = arith.constant dense<0.000000e+00> : vector<1x4xf32>
    %53 = vector.multi_reduction <add>, %52, %cst_36 [2] : vector<1x4x16xf32> to vector<1x4xf32>
    %cst_37 = arith.constant dense<0.000000e+00> : vector<4xf32>
    %54 = vector.multi_reduction <add>, %51, %cst_37 [0] : vector<1x4xf32> to vector<4xf32>
    %55 = vector.shape_cast %54 : vector<4xf32> to vector<1x4xf32>
    %cst_38 = arith.constant dense<0.000000e+00> : vector<4xf32>
    %56 = vector.multi_reduction <add>, %53, %cst_38 [0] : vector<1x4xf32> to vector<4xf32>
    %57 = vector.shape_cast %56 : vector<4xf32> to vector<1x4xf32>
    %58 = tpu.concatenate %55, %57 in 0 : vector<1x4xf32>, vector<1x4xf32> -> vector<2x4xf32>
    %59 = vector.shape_cast %58 : vector<2x4xf32> to vector<1x2x4xf32>
    %c0_39 = arith.constant 0 : index
    %c0_40 = arith.constant 0 : index
    %c0_41 = arith.constant 0 : index
    %60 = vector.load %arg6[%c0_39, %c0_40, %c0_41] : memref<1x2x4xf32, #tpu.memory_space<vmem>>, vector<1x2x4xf32>
    tpu.vector_store %arg6[%c0_39, %c0_40, %c0_41], %59 {strides = array<i32>} : memref<1x2x4xf32, #tpu.memory_space<vmem>>, vector<1x2x4xf32>,
    return
  }
  func.func @transform_0(%arg0: i32) -> (i32, i32, i32) {
    %c0_i32 = arith.constant 0 : i32
    %c0_i32_0 = arith.constant 0 : i32
    %c0_i32_1 = arith.constant 0 : i32
    return %arg0, %c0_i32, %c0_i32_0 : i32, i32, i32
  }
  func.func @transform_1(%arg0: i32) -> (i32, i32, i32) {
    %c0_i32 = arith.constant 0 : i32
    %c0_i32_0 = arith.constant 0 : i32
    %c0_i32_1 = arith.constant 0 : i32
    %c0_i32_2 = arith.constant 0 : i32
    return %c0_i32, %c0_i32_0, %c0_i32_1 : i32, i32, i32
  }
  func.func @transform_2(%arg0: i32) -> (i32, i32, i32) {
    %c0_i32 = arith.constant 0 : i32
    %c0_i32_0 = arith.constant 0 : i32
    %c0_i32_1 = arith.constant 0 : i32
    %c0_i32_2 = arith.constant 0 : i32
    return %c0_i32, %c0_i32_0, %c0_i32_1 : i32, i32, i32
  }
  func.func @transform_3(%arg0: i32) -> (i32, i32, i32) {
    %c0_i32 = arith.constant 0 : i32
    %c0_i32_0 = arith.constant 0 : i32
    %c0_i32_1 = arith.constant 0 : i32
    %c0_i32_2 = arith.constant 0 : i32
    return %c0_i32, %c0_i32_0, %c0_i32_1 : i32, i32, i32
  }
  func.func @transform_4(%arg0: i32) -> (i32, i32, i32) {
    %c0_i32 = arith.constant 0 : i32
    %c0_i32_0 = arith.constant 0 : i32
    %c0_i32_1 = arith.constant 0 : i32
    return %arg0, %c0_i32, %c0_i32_0 : i32, i32, i32
  }
  func.func @transform_5(%arg0: i32) -> (i32, i32, i32) {
    %c0_i32 = arith.constant 0 : i32
    %c0_i32_0 = arith.constant 0 : i32
    %c0_i32_1 = arith.constant 0 : i32
    return %arg0, %c0_i32, %c0_i32_0 : i32, i32, i32
  }
}

</mosaic_0001>

<llo_original>
// kernel: res_block_forward.3
$region0: #{res_block_forward.3}
  #allocation0 [shape = 'u32[]', space=smem, size = 0x4, offset = 0x4, fixed_abs, tag = 'smem constant byte address 0x4 - core index']
  #allocation1 [shape = 'u32[144,128]{1,0:T(1,128)}', space=vmem, size = 0x12000, scoped, tag = 'internal scratch']
  %s0 = inlined_call_operand.vmem [shape: f32[2,4,16], index: 0, kind: input, shape index: {}]
  %s1 = inlined_call_operand.vmem [shape: bf16[3,4,4], index: 1, kind: input, shape index: {}]
  %s2 = inlined_call_operand.vmem [shape: f32[2,2,4], index: 2, kind: output, shape index: {}]
  %s3 = sld [smem:[#allocation0]]
  $region41: #{res_block_forward.3} parent=0
    _
  %s5 = ssub.s32 1, %s3
  %s6 = scalar_select 0, %s5, %s3
  loop: start=0, step=1, limit=4
  $region2: #{res_block_forward.3} parent=0 // loop_pre_header
    _
  $region3: #{res_block_forward.3} parent=0 // loop_header
    %s8 = sphi 0, %s12
    %p9 = scmp.ge.s32.totalorder %s8, 4
    %s18 = sphi 0, %s20
    %s21 = sphi 0, %s18
    %s22 = sphi 0, %s21
    %s38 = sphi 0, %s22
    %s42 = sphi 0, %s42
    %s44 = sphi 0, %s42
    %s45 = sphi 0, %s44
    %s59 = sphi 0, %s45
    %s65 = sphi 0, %s67
    %s68 = sphi 0, %s65
    %s69 = sphi 0, %s68
    %s85 = sphi 0, %s69
  $region4: #{res_block_forward.3} parent=0 // loop_header_branch
    %11 = sbr.rel (%p9) target = $region8
  $region5: #{res_block_forward.3} parent=0 // loop_body
    %s13 = ssub.s32 %s8, 1
    %s14 = ssub.s32 %s8, 2
    %s15 = sadd.s32 %s8, 1
    %s16 = ssub.s32 %s8, %s15
    %p17 = scmp.eq.s32.totalorder %s16, 0
    %s19 = sadd.s32 %s18, 1
    %s20 = scalar_select %p17, %s18, %s19
    %p23 = pneg %p17
    %p24 = scmp.eq.s32.totalorder %s8, 1
    %p25 = por %p23, %p24
    %p26 = scmp.ne.s32.totalorder %s18, %s21
    %p27 = scmp.eq.s32.totalorder %s8, 0
    %p28 = por %p26, %p27
    %p29 = scmp.ne.s32.totalorder %s18, %s21
    %p30 = scmp.eq.s32.totalorder %s13, 1
    %p31 = por %p29, %p30
    %p32 = scmp.ne.s32.totalorder %s21, %s22
    %p33 = scmp.eq.s32.totalorder %s13, 0
    %p34 = por %p32, %p33
    %p35 = scmp.ne.s32.totalorder %s21, %s22
    %p36 = scmp.eq.s32.totalorder %s14, 1
    %p37 = por %p35, %p36
    %p39 = scmp.ne.s32.totalorder %s22, %s38
    %p40 = scmp.eq.s32.totalorder %s14, 0
    %p41 = por %p39, %p40
    %s43 = sadd.s32 %s42, 1
    %p46 = scmp.eq.s32.totalorder %s8, 1
    %p47 = scmp.ne.s32.totalorder %s42, %s44
    %p48 = scmp.eq.s32.totalorder %s8, 0
    %p49 = por %p47, %p48
    %p50 = scmp.ne.s32.totalorder %s42, %s44
    %p51 = scmp.eq.s32.totalorder %s13, 1
    %p52 = por %p50, %p51
    %p53 = scmp.ne.s32.totalorder %s44, %s45
    %p54 = scmp.eq.s32.totalorder %s13, 0
    %p55 = por %p53, %p54
    %p56 = scmp.ne.s32.totalorder %s44, %s45
    %p57 = scmp.eq.s32.totalorder %s14, 1
    %p58 = por %p56, %p57
    %p60 = scmp.ne.s32.totalorder %s45, %s59
    %p61 = scmp.eq.s32.totalorder %s14, 0
    %p62 = por %p60, %p61
    %s63 = ssub.s32 %s8, %s15
    %p64 = scmp.eq.s32.totalorder %s63, 0
    %s66 = sadd.s32 %s65, 1
    %s67 = scalar_select %p64, %s65, %s66
    %p70 = pneg %p64
    %p71 = scmp.eq.s32.totalorder %s8, 1
    %p72 = por %p70, %p71
    %p73 = scmp.ne.s32.totalorder %s65, %s68
    %p74 = scmp.eq.s32.totalorder %s8, 0
    %p75 = por %p73, %p74
    %p76 = scmp.ne.s32.totalorder %s65, %s68
    %p77 = scmp.eq.s32.totalorder %s13, 1
    %p78 = por %p76, %p77
    %p79 = scmp.ne.s32.totalorder %s68, %s69
    %p80 = scmp.eq.s32.totalorder %s13, 0
    %p81 = por %p79, %p80
    %p82 = scmp.ne.s32.totalorder %s68, %s69
    %p83 = scmp.eq.s32.totalorder %s14, 1
    %p84 = por %p82, %p83
    %p86 = scmp.ne.s32.totalorder %s69, %s85
    %p87 = scmp.eq.s32.totalorder %s14, 0
    %p88 = por %p86, %p87
    %p89 = scmp.le.s32.totalorder 1, %s8
    %p90 = scmp.lt.s32.totalorder %s8, 3
    %p91 = pnand %p89, %p90
    %p92 = pneg %p91
    // Predicated region
    $region9: #{res_block_forward.3} parent=5 // pred_check
      _
    $region10: #{res_block_forward.3} parent=5 // pred_check_branch
      %94 = sbr.rel (%p91) target = $region12
    $region11: #{res_block_forward.3} parent=5 // pred_region
      %s95 = ssub.s32 %s8, 1
      // Predicated region
      $region13: #{res_block_forward.3} parent=11 // pred_check
        %p96 = pneg %p55
      $region14: #{res_block_forward.3} parent=11 // pred_check_branch
        %98 = sbr.rel (%p96) target = $region16
      $region15: #{res_block_forward.3} parent=11 // pred_region
        _
      $region16: #{res_block_forward.3} parent=11 // pred_fallthru
        _
    $region12: #{res_block_forward.3} parent=5 // pred_fallthru
      _
    %p99 = scmp.lt.s32.totalorder %s8, 2
    // Predicated region
    $region17: #{res_block_forward.3} parent=5 // pred_check
      %p100 = pneg %p99
    $region18: #{res_block_forward.3} parent=5 // pred_check_branch
      %102 = sbr.rel (%p100) target = $region20
    $region19: #{res_block_forward.3} parent=5 // pred_region
      // Predicated region
      $region21: #{res_block_forward.3} parent=19 // pred_check
        %p103 = pneg %p28
      $region22: #{res_block_forward.3} parent=19 // pred_check_branch
        %105 = sbr.rel (%p103) target = $region24
      $region23: #{res_block_forward.3} parent=19 // pred_region
        %p106 = scmp.lt.s32.totalorder %s8, 1
        %s107 = scalar_select %p106, %s8, 1
        %s108 = smul.addr %s107, 4
        %s109 = scalar_lea.vmem %s0, %s108
      $region24: #{res_block_forward.3} parent=19 // pred_fallthru
        _
    $region20: #{res_block_forward.3} parent=5 // pred_fallthru
      _
    %p110 = scmp.le.s32.totalorder 1, %s8
    %p111 = scmp.lt.s32.totalorder %s8, 3
    %p112 = pnand %p110, %p111
    %p113 = pneg %p112
    // Predicated region
    $region25: #{res_block_forward.3} parent=5 // pred_check
      _
    $region26: #{res_block_forward.3} parent=5 // pred_check_branch
      %115 = sbr.rel (%p112) target = $region28
    $region27: #{res_block_forward.3} parent=5 // pred_region
      %s116 = ssub.s32 %s8, 1
      %p117 = scmp.lt.s32.totalorder %s13, 1
      %s118 = scalar_select %p117, %s13, 1
      %s119 = smul.addr %s118, 4
      %s120 = scalar_lea.vmem %s0, %s119
      %p121 = pneg %p34
      %p122 = pneg %p31
      %p123 = pneg %p55
      %p124 = pneg %p52
      %p125 = pneg %p81
      %p126 = pneg %p78
      %p127 = scmp.lt.s32.totalorder %s13, 1
      %s128 = scalar_select %p127, %s13, 1
      %s129 = smul.addr %s128, 2
      %s130 = scalar_lea.vmem %s2, %s129
      %p131 = scmp.lt.s32.totalorder %s13, 1
      %s132 = scalar_select %p131, %s13, 1
      %s133 = smul.addr %s132, 4
      %s134 = scalar_lea.vmem %s0, %s133
      %p135 = scmp.lt.s32.totalorder %s13, 1
      %s136 = scalar_select %p135, %s13, 1
      %s137 = smul.addr %s136, 2
      %s138 = scalar_lea.vmem %s2, %s137
      %v140 = vld [vmem:[%s134] sm:$0xf]
      %v141 = vpack.c.bf16 %v140, %v140
      %v142 = vld [vmem:[%s1] sm:$0x3]
      %vm143 = vcmask 31744
      %v145 = vsel %vm143, %v142, 0
      %vm147 = vcmask 1041408
      %v149 = vsel %vm147, %v141, 0
      %151 = vmatprep.subr.bf16.mxu0 0
      %152 = vmatpush1.bf16.msra.mxu0 0
      %153 = vmatprep.subr.bf16.mxu0 0
      %154 = vmatpush1.bf16.msra.mxu0 0
      %155 = vmatprep.subr.bf16.mxu0 0
      %156 = vmatpush1.bf16.msra.mxu0 0
      %157 = vmatprep.subr.bf16.mxu0 0
      %158 = vmatpush1.bf16.msra.mxu0 0
      %159 = vmatprep.subr.bf16.mxu0 0
      %160 = vmatpush1.bf16.msra.mxu0 0
      %161 = vmatprep.subr.bf16.mxu0 0
      %162 = vmatpush1.bf16.msra.mxu0 0
      %163 = vmatprep.subr.bf16.mxu0 0
      %164 = vmatpush1.bf16.msra.mxu0 0
      %165 = vmatprep.subr.bf16.mxu0 0
      %166 = vmatpush1.bf16.msra.mxu0 %v149
      %167 = vmatprep.subr.bf16.mxu0 0
      %168 = vmatpush2.bf16.msra.mxu0 0
      %169 = vmatprep.subr.bf16.mxu0 0
      %170 = vmatpush2.bf16.msra.mxu0 0
      %171 = vmatprep.subr.bf16.mxu0 0
      %172 = vmatpush2.bf16.msra.mxu0 0
      %173 = vmatprep.subr.bf16.mxu0 0
      %174 = vmatpush2.bf16.msra.mxu0 0
      %175 = vmatprep.subr.bf16.mxu0 0
      %176 = vmatpush2.bf16.msra.mxu0 0
      %177 = vmatprep.subr.bf16.mxu0 0
      %178 = vmatpush2.bf16.msra.mxu0 0
      %179 = vmatprep.subr.bf16.mxu0 0
      %180 = vmatpush2.bf16.msra.mxu0 0
      %181 = vmatprep.subr.bf16.mxu0 0
      %182 = vmatpush2.bf16.msra.mxu0 0
      %183 = vmatprep.mubr.bf16.mxu0 0
      %184 = vmatmul.mubr.bf16.gmra.mxu0 %v145
      %v185 = vpop.f32.mrf.mxu0
      %v186 = vadd.f32 0.0, %v185
      %v187 = vpop.f32.mrf.mxu0
      %v188 = vpop.f32.mrf.mxu0
      %v189 = vpop.f32.mrf.mxu0
      %190 = vdwg.mxu0
      %s191 = scalar_lea.vmem %s1, 2
      %v192 = vld [vmem:[%s191] sm:$0x3]
      %v194 = vsel %vm143, %v192, 0
      %196 = vmatprep.subr.bf16.mxu0 0
      %197 = vmatpush1.bf16.msra.mxu0 0
      %198 = vmatprep.subr.bf16.mxu0 0
      %199 = vmatpush1.bf16.msra.mxu0 0
      %200 = vmatprep.subr.bf16.mxu0 0
      %201 = vmatpush1.bf16.msra.mxu0 0
      %202 = vmatprep.subr.bf16.mxu0 0
      %203 = vmatpush1.bf16.msra.mxu0 0
      %204 = vmatprep.subr.bf16.mxu0 0
      %205 = vmatpush1.bf16.msra.mxu0 0
      %206 = vmatprep.subr.bf16.mxu0 0
      %207 = vmatpush1.bf16.msra.mxu0 0
      %208 = vmatprep.subr.bf16.mxu0 0
      %209 = vmatpush1.bf16.msra.mxu0 0
      %210 = vmatprep.subr.bf16.mxu0 0
      %211 = vmatpush1.bf16.msra.mxu0 %v149
      %212 = vmatprep.subr.bf16.mxu0 0
      %213 = vmatpush2.bf16.msra.mxu0 0
      %214 = vmatprep.subr.bf16.mxu0 0
      %215 = vmatpush2.bf16.msra.mxu0 0
      %216 = vmatprep.subr.bf16.mxu0 0
      %217 = vmatpush2.bf16.msra.mxu0 0
      %218 = vmatprep.subr.bf16.mxu0 0
      %219 = vmatpush2.bf16.msra.mxu0 0
      %220 = vmatprep.subr.bf16.mxu0 0
      %221 = vmatpush2.bf16.msra.mxu0 0
      %222 = vmatprep.subr.bf16.mxu0 0
      %223 = vmatpush2.bf16.msra.mxu0 0
      %224 = vmatprep.subr.bf16.mxu0 0
      %225 = vmatpush2.bf16.msra.mxu0 0
      %226 = vmatprep.subr.bf16.mxu0 0
      %227 = vmatpush2.bf16.msra.mxu0 0
      %228 = vmatprep.mubr.bf16.mxu0 0
      %229 = vmatmul.mubr.bf16.gmra.mxu0 %v194
      %v230 = vpop.f32.mrf.mxu0
      %v231 = vadd.f32 0.0, %v230
      %v232 = vpop.f32.mrf.mxu0
      %v233 = vpop.f32.mrf.mxu0
      %v234 = vpop.f32.mrf.mxu0
      %235 = vdwg.mxu0
      %s236 = scalar_lea.vmem %s1, 4
      %v237 = vld [vmem:[%s236] sm:$0x3]
      %v239 = vsel %vm143, %v237, 0
      %241 = vmatprep.subr.bf16.mxu0 0
      %242 = vmatpush1.bf16.msra.mxu0 0
      %243 = vmatprep.subr.bf16.mxu0 0
      %244 = vmatpush1.bf16.msra.mxu0 0
      %245 = vmatprep.subr.bf16.mxu0 0
      %246 = vmatpush1.bf16.msra.mxu0 0
      %247 = vmatprep.subr.bf16.mxu0 0
      %248 = vmatpush1.bf16.msra.mxu0 0
      %249 = vmatprep.subr.bf16.mxu0 0
      %250 = vmatpush1.bf16.msra.mxu0 0
      %251 = vmatprep.subr.bf16.mxu0 0
      %252 = vmatpush1.bf16.msra.mxu0 0
      %253 = vmatprep.subr.bf16.mxu0 0
      %254 = vmatpush1.bf16.msra.mxu0 0
      %255 = vmatprep.subr.bf16.mxu0 0
      %256 = vmatpush1.bf16.msra.mxu0 %v149
      %257 = vmatprep.subr.bf16.mxu0 0
      %258 = vmatpush2.bf16.msra.mxu0 0
      %259 = vmatprep.subr.bf16.mxu0 0
      %260 = vmatpush2.bf16.msra.mxu0 0
      %261 = vmatprep.subr.bf16.mxu0 0
      %262 = vmatpush2.bf16.msra.mxu0 0
      %263 = vmatprep.subr.bf16.mxu0 0
      %264 = vmatpush2.bf16.msra.mxu0 0
      %265 = vmatprep.subr.bf16.mxu0 0
      %266 = vmatpush2.bf16.msra.mxu0 0
      %267 = vmatprep.subr.bf16.mxu0 0
      %268 = vmatpush2.bf16.msra.mxu0 0
      %269 = vmatprep.subr.bf16.mxu0 0
      %270 = vmatpush2.bf16.msra.mxu0 0
      %271 = vmatprep.subr.bf16.mxu0 0
      %272 = vmatpush2.bf16.msra.mxu0 0
      %273 = vmatprep.mubr.bf16.mxu0 0
      %274 = vmatmul.mubr.bf16.gmra.mxu0 %v239
      %v275 = vpop.f32.mrf.mxu0
      %v276 = vadd.f32 0.0, %v275
      %v277 = vpop.f32.mrf.mxu0
      %v278 = vpop.f32.mrf.mxu0
      %v279 = vpop.f32.mrf.mxu0
      %280 = vdwg.mxu0
      %282 = vrot.lane.b32.xlu0 %v186, 1
      %v283 = vpop.permute.xlu0 %282
      %vm285 = vcmask 7168
      %v286 = vsel %vm285, 0.0, %v283
      %v287 = vadd.f32 %v286, %v231
      %289 = vrot.lane.b32.xlu0 %v276, 127
      %v290 = vpop.permute.xlu0 %289
      %vm292 = vcmask 121856
      %v293 = vsel %vm292, %v290, 0.0
      %v294 = vadd.f32 %v287, %v293
      %vm295 = vcmask 125952
      %v296 = vsel %vm295, %v294, 0.0
      %297 = vadd.xlane.f32.xlu0 %v296
      %v298 = vpop.xlane.xlu0 %297
      %v299 = vmul.f32 %v294, %v294
      %v300 = vsel %vm295, %v299, 0.0
      %301 = vadd.xlane.f32.xlu0 %v300
      %v302 = vpop.xlane.xlu0 %301
      %v303 = vadd.f32 %v298, 0.0
      %v304 = vadd.f32 %v302, 0.0
      %v306 = vlaneseq
      %v307 = vand.u32 %v306, 127
      %v308 = vlaneseq
      %v309 = vshrl.u32 %v308, 7
      %v310 = vsub.s32 %v307, %v309
      %v311 = vrot.slane %v303, %v310
      %v314 = vlaneseq
      %v315 = vshrl.u32 %v314, 7
      %v316 = vsub.s32 %v307, %v315
      %v317 = vrot.slane %v304, %v316
      %vm319 = vcmask 1040384
      %v320 = vsel %vm319, %v311, %v317
      %vm321 = vcmask 25600
      %322 = vst.msk [vmem:[%s138] sm:$0x3] %vm321, %v320
      %p323 = scmp.lt.s32.totalorder %s13, 1
      %s324 = scalar_select %p323, %s13, 1
      %s325 = smul.addr %s324, 2
      %s326 = scalar_lea.vmem %s2, %s325
      // Predicated region
      $region29: #{res_block_forward.3} parent=27 // pred_check
        %p327 = pneg %p78
      $region30: #{res_block_forward.3} parent=27 // pred_check_branch
        %329 = sbr.rel (%p327) target = $region32
      $region31: #{res_block_forward.3} parent=27 // pred_region
        _
      $region32: #{res_block_forward.3} parent=27 // pred_fallthru
        _
    $region28: #{res_block_forward.3} parent=5 // pred_fallthru
      _
    %p330 = scmp.le.s32.totalorder 2, %s8
    // Predicated region
    $region33: #{res_block_forward.3} parent=5 // pred_check
      %p331 = pneg %p330
    $region34: #{res_block_forward.3} parent=5 // pred_check_branch
      %333 = sbr.rel (%p331) target = $region36
    $region35: #{res_block_forward.3} parent=5 // pred_region
      %s334 = ssub.s32 %s8, 2
      // Predicated region
      $region37: #{res_block_forward.3} parent=35 // pred_check
        %p335 = pneg %p84
      $region38: #{res_block_forward.3} parent=35 // pred_check_branch
        %337 = sbr.rel (%p335) target = $region40
      $region39: #{res_block_forward.3} parent=35 // pred_region
        %p338 = scmp.lt.s32.totalorder %s14, 1
        %s339 = scalar_select %p338, %s14, 1
        %s340 = smul.addr %s339, 2
        %s341 = scalar_lea.vmem %s2, %s340
      $region40: #{res_block_forward.3} parent=35 // pred_fallthru
        _
    $region36: #{res_block_forward.3} parent=5 // pred_fallthru
      _
  $region6: #{res_block_forward.3} parent=0 // loop_footer
    %s12 = sadd.s32 1, %s8
  $region7: #{res_block_forward.3} parent=0 // loop_footer_branch
    %7 = sbr.rel target = $region3
  $region8: #{res_block_forward.3} parent=0 // loop_exit
    _

// kernel: res_block_forward.5
$region0: #{res_block_forward.5}
  #allocation0 [shape = 'u32[]', space=smem, size = 0x4, offset = 0x4, fixed_abs, tag = 'smem constant byte address 0x4 - core index']
  #allocation1 [shape = 'u32[144,128]{1,0:T(1,128)}', space=vmem, size = 0x12000, scoped, tag = 'internal scratch']
  %s0 = inlined_call_operand.vmem [shape: bf16[2,4,16], index: 0, kind: input, shape index: {}]
  %s1 = inlined_call_operand.vmem [shape: f32[2,4,1], index: 1, kind: input, shape index: {}]
  %s2 = inlined_call_operand.hbm [shape: f32[2,4,16], index: 2, kind: output, shape index: {}]
  %s3 = sld [smem:[#allocation0]]
  $region41: #{res_block_forward.5} parent=0
    _
  %s5 = ssub.s32 1, %s3
  %s6 = scalar_select 0, %s5, %s3
  $region1: #{res_block_forward.5} parent=0
    #allocation2 [shape = 'u8[4096]{0}', space=vmem, size = 0x1000, scoped, tag = 'output window, operand 0']
    #allocation3 [shape = 's32[2]{0}', space=sflag, size = 0x8, scoped, tag = 'scoped memory for res_block_forward.5']
    %7 = vsyncpa [#allocation3], 0
    %s8 = scalar_lea.sflag [#allocation3], 1
    %9 = vsyncpa %s8, 0
    loop: start=0, step=1, limit=4
    $region2: #{res_block_forward.5} parent=1 // loop_pre_header
      _
    $region3: #{res_block_forward.5} parent=1 // loop_header
      %s11 = sphi 0, %s15
      %p12 = scmp.ge.s32.totalorder %s11, 4
      %s21 = sphi 0, %s23
      %s24 = sphi 0, %s21
      %s25 = sphi 0, %s24
      %s41 = sphi 0, %s25
      %s45 = sphi 0, %s45
      %s47 = sphi 0, %s45
      %s48 = sphi 0, %s47
      %s62 = sphi 0, %s48
      %s68 = sphi 0, %s70
      %s71 = sphi 0, %s68
      %s72 = sphi 0, %s71
      %s88 = sphi 0, %s72
    $region4: #{res_block_forward.5} parent=1 // loop_header_branch
      %14 = sbr.rel (%p12) target = $region8
    $region5: #{res_block_forward.5} parent=1 // loop_body
      %s16 = ssub.s32 %s11, 1
      %s17 = ssub.s32 %s11, 2
      %s18 = sadd.s32 %s11, 1
      %s19 = ssub.s32 %s11, %s18
      %p20 = scmp.eq.s32.totalorder %s19, 0
      %s22 = sadd.s32 %s21, 1
      %s23 = scalar_select %p20, %s21, %s22
      %p26 = pneg %p20
      %p27 = scmp.eq.s32.totalorder %s11, 1
      %p28 = por %p26, %p27
      %p29 = scmp.ne.s32.totalorder %s21, %s24
      %p30 = scmp.eq.s32.totalorder %s11, 0
      %p31 = por %p29, %p30
      %p32 = scmp.ne.s32.totalorder %s21, %s24
      %p33 = scmp.eq.s32.totalorder %s16, 1
      %p34 = por %p32, %p33
      %p35 = scmp.ne.s32.totalorder %s24, %s25
      %p36 = scmp.eq.s32.totalorder %s16, 0
      %p37 = por %p35, %p36
      %p38 = scmp.ne.s32.totalorder %s24, %s25
      %p39 = scmp.eq.s32.totalorder %s17, 1
      %p40 = por %p38, %p39
      %p42 = scmp.ne.s32.totalorder %s25, %s41
      %p43 = scmp.eq.s32.totalorder %s17, 0
      %p44 = por %p42, %p43
      %s46 = sadd.s32 %s45, 1
      %p49 = scmp.eq.s32.totalorder %s11, 1
      %p50 = scmp.ne.s32.totalorder %s45, %s47
      %p51 = scmp.eq.s32.totalorder %s11, 0
      %p52 = por %p50, %p51
      %p53 = scmp.ne.s32.totalorder %s45, %s47
      %p54 = scmp.eq.s32.totalorder %s16, 1
      %p55 = por %p53, %p54
      %p56 = scmp.ne.s32.totalorder %s47, %s48
      %p57 = scmp.eq.s32.totalorder %s16, 0
      %p58 = por %p56, %p57
      %p59 = scmp.ne.s32.totalorder %s47, %s48
      %p60 = scmp.eq.s32.totalorder %s17, 1
      %p61 = por %p59, %p60
      %p63 = scmp.ne.s32.totalorder %s48, %s62
      %p64 = scmp.eq.s32.totalorder %s17, 0
      %p65 = por %p63, %p64
      %s66 = ssub.s32 %s11, %s18
      %p67 = scmp.eq.s32.totalorder %s66, 0
      %s69 = sadd.s32 %s68, 1
      %s70 = scalar_select %p67, %s68, %s69
      %p73 = pneg %p67
      %p74 = scmp.eq.s32.totalorder %s11, 1
      %p75 = por %p73, %p74
      %p76 = scmp.ne.s32.totalorder %s68, %s71
      %p77 = scmp.eq.s32.totalorder %s11, 0
      %p78 = por %p76, %p77
      %p79 = scmp.ne.s32.totalorder %s68, %s71
      %p80 = scmp.eq.s32.totalorder %s16, 1
      %p81 = por %p79, %p80
      %p82 = scmp.ne.s32.totalorder %s71, %s72
      %p83 = scmp.eq.s32.totalorder %s16, 0
      %p84 = por %p82, %p83
      %p85 = scmp.ne.s32.totalorder %s71, %s72
      %p86 = scmp.eq.s32.totalorder %s17, 1
      %p87 = por %p85, %p86
      %p89 = scmp.ne.s32.totalorder %s72, %s88
      %p90 = scmp.eq.s32.totalorder %s17, 0
      %p91 = por %p89, %p90
      %p92 = scmp.le.s32.totalorder 1, %s11
      %p93 = scmp.lt.s32.totalorder %s11, 3
      %p94 = pnand %p92, %p93
      %p95 = pneg %p94
      // Predicated region
      $region9: #{res_block_forward.5} parent=5 // pred_check
        _
      $region10: #{res_block_forward.5} parent=5 // pred_check_branch
        %97 = sbr.rel (%p94) target = $region12
      $region11: #{res_block_forward.5} parent=5 // pred_region
        %s98 = ssub.s32 %s11, 1
        // Predicated region
        $region13: #{res_block_forward.5} parent=11 // pred_check
          %p99 = pneg %p58
        $region14: #{res_block_forward.5} parent=11 // pred_check_branch
          %101 = sbr.rel (%p99) target = $region16
        $region15: #{res_block_forward.5} parent=11 // pred_region
          _
        $region16: #{res_block_forward.5} parent=11 // pred_fallthru
          _
      $region12: #{res_block_forward.5} parent=5 // pred_fallthru
        _
      %p102 = scmp.lt.s32.totalorder %s11, 2
      // Predicated region
      $region17: #{res_block_forward.5} parent=5 // pred_check
        %p103 = pneg %p102
      $region18: #{res_block_forward.5} parent=5 // pred_check_branch
        %105 = sbr.rel (%p103) target = $region20
      $region19: #{res_block_forward.5} parent=5 // pred_region
        // Predicated region
        $region21: #{res_block_forward.5} parent=19 // pred_check
          %p106 = pneg %p31
        $region22: #{res_block_forward.5} parent=19 // pred_check_branch
          %108 = sbr.rel (%p106) target = $region24
        $region23: #{res_block_forward.5} parent=19 // pred_region
          %p109 = scmp.lt.s32.totalorder %s11, 1
          %s110 = scalar_select %p109, %s11, 1
          %s111 = smul.addr %s110, 2
          %s112 = scalar_lea.vmem %s0, %s111
        $region24: #{res_block_forward.5} parent=19 // pred_fallthru
          _
      $region20: #{res_block_forward.5} parent=5 // pred_fallthru
        _
      %p113 = scmp.le.s32.totalorder 1, %s11
      %p114 = scmp.lt.s32.totalorder %s11, 3
      %p115 = pnand %p113, %p114
      %p116 = pneg %p115
      // Predicated region
      $region25: #{res_block_forward.5} parent=5 // pred_check
        _
      $region26: #{res_block_forward.5} parent=5 // pred_check_branch
        %118 = sbr.rel (%p115) target = $region28
      $region27: #{res_block_forward.5} parent=5 // pred_region
        %s119 = ssub.s32 %s11, 1
        %p120 = scmp.lt.s32.totalorder %s16, 1
        %s121 = scalar_select %p120, %s16, 1
        %s122 = smul.addr %s121, 2
        %s123 = scalar_lea.vmem %s0, %s122
        %p124 = pneg %p37
        %p125 = pneg %p34
        %p126 = pneg %p58
        %p127 = pneg %p55
        %p128 = pneg %p84
        %p129 = pneg %p81
        %s130 = sand.u32 %s71, 1
        %s131 = scalar_lea.sflag [#allocation3], %s130
        %s132 = sand.u32 %s71, 1
        %s133 = smul.addr %s132, 4
        %s134 = scalar_lea.vmem [#allocation2], %s133
        %p135 = scmp.lt.s32.totalorder %s16, 1
        %s136 = scalar_select %p135, %s16, 1
        %s137 = smul.addr %s136, 2
        %s138 = scalar_lea.vmem %s0, %s137
        %v139 = vld [vmem:[%s138] sm:$0x3]
        %v140 = vunpack.c.l.bf16 %v139
        %v141 = vld [vmem:[%s1] sm:$0xf]
        %143 = vset.pattern.permute.xlu0 0
        %144 = vperm.xlu0 %143, %v141
        %v145 = vpop.permute.xlu0 %144
        %v147 = vmul.f32 %v140, %v145
        %s148 = scalar_lea.vmem %s1, 4
        %v149 = vld [vmem:[%s148] sm:$0xf]
        %151 = vset.pattern.permute.xlu0 0
        %152 = vperm.xlu0 %151, %v149
        %v153 = vpop.permute.xlu0 %152
        %v155 = vadd.f32 %v147, %v153
        %v156 = vmax.f32 %v155, 0.0
        %vm157 = vcmask 125952
        %158 = vst.msk [vmem:[%s134] sm:$0xf] %vm157, %v156
        %s159 = sand.u32 %s71, 1
        %s160 = scalar_lea.sflag [#allocation3], %s159
        %s161 = sand.u32 %s71, 1
        %s162 = smul.addr %s161, 4
        %s163 = scalar_lea.vmem [#allocation2], %s162
        // Predicated region
        $region29: #{res_block_forward.5} parent=27 // pred_check
          %p164 = pneg %p81
        $region30: #{res_block_forward.5} parent=27 // pred_check_branch
          %166 = sbr.rel (%p164) target = $region32
        $region31: #{res_block_forward.5} parent=27 // pred_region
          %s168 = ssub.s32 64, 64
          %169 = vsyncadd %s160, %s168
          %s170 = smul.addr %s16, 64
          %s171 = scalar_lea.hbm %s2, %s170
          %s173 = sshll.u32 %s163, 4
          %s174 = int_to_ptr.vmem [resolvable:$true] %s173
          %176 = dma.vmem_to_hbm [thread:$0]  %s174, 64, %s171, %s160
        $region32: #{res_block_forward.5} parent=27 // pred_fallthru
          _
      $region28: #{res_block_forward.5} parent=5 // pred_fallthru
        _
      %p177 = scmp.le.s32.totalorder 2, %s11
      // Predicated region
      $region33: #{res_block_forward.5} parent=5 // pred_check
        %p178 = pneg %p177
      $region34: #{res_block_forward.5} parent=5 // pred_check_branch
        %180 = sbr.rel (%p178) target = $region36
      $region35: #{res_block_forward.5} parent=5 // pred_region
        %s181 = ssub.s32 %s11, 2
        // Predicated region
        $region37: #{res_block_forward.5} parent=35 // pred_check
          %p182 = pneg %p87
        $region38: #{res_block_forward.5} parent=35 // pred_check_branch
          %184 = sbr.rel (%p182) target = $region40
        $region39: #{res_block_forward.5} parent=35 // pred_region
          %s185 = sand.u32 %s72, 1
          %s186 = scalar_lea.sflag [#allocation3], %s185
          %s187 = sand.u32 %s72, 1
          %s188 = smul.addr %s187, 4
          %s189 = scalar_lea.vmem [#allocation2], %s188
          %190 = dma.done %s186, 64
        $region40: #{res_block_forward.5} parent=35 // pred_fallthru
          _
      $region36: #{res_block_forward.5} parent=5 // pred_fallthru
        _
    $region6: #{res_block_forward.5} parent=1 // loop_footer
      %s15 = sadd.s32 1, %s11
    $region7: #{res_block_forward.5} parent=1 // loop_footer_branch
      %10 = sbr.rel target = $region3
    $region8: #{res_block_forward.5} parent=1 // loop_exit
      _
    %191 = vsyncpa [#allocation3], 1
    %s192 = scalar_lea.sflag [#allocation3], 1
    %193 = vsyncpa %s192, 1

// kernel: res_block_forward.4
$region0: #{res_block_forward.4}
  #allocation0 [shape = 'u32[]', space=smem, size = 0x4, offset = 0x4, fixed_abs, tag = 'smem constant byte address 0x4 - core index']
  #allocation1 [shape = 'u32[144,128]{1,0:T(1,128)}', space=vmem, size = 0x12000, scoped, tag = 'internal scratch']
  %s0 = inlined_call_operand.vmem [shape: f32[2,4,16], index: 0, kind: input, shape index: {}]
  %s1 = inlined_call_operand.vmem [shape: bf16[3,4,4], index: 1, kind: input, shape index: {}]
  %s2 = inlined_call_operand.vmem [shape: bf16[3,4,4], index: 2, kind: input, shape index: {}]
  %s3 = inlined_call_operand.vmem [shape: f32[2,4,1], index: 3, kind: input, shape index: {}]
  %s4 = inlined_call_operand.vmem [shape: bf16[2,4,16], index: 4, kind: output, shape index: {0}]
  %s5 = inlined_call_operand.vmem [shape: f32[2,2,4], index: 5, kind: output, shape index: {1}]
  %6 = xla_tuple %s4, %s5
  %s7 = sld [smem:[#allocation0]]
  $region57: #{res_block_forward.4} parent=0
    _
  %s9 = ssub.s32 1, %s7
  %s10 = scalar_select 0, %s9, %s7
  loop: start=0, step=1, limit=4
  $region2: #{res_block_forward.4} parent=0 // loop_pre_header
    _
  $region3: #{res_block_forward.4} parent=0 // loop_header
    %s12 = sphi 0, %s16
    %p13 = scmp.ge.s32.totalorder %s12, 4
    %s22 = sphi 0, %s24
    %s25 = sphi 0, %s22
    %s26 = sphi 0, %s25
    %s42 = sphi 0, %s26
    %s46 = sphi 0, %s46
    %s48 = sphi 0, %s46
    %s49 = sphi 0, %s48
    %s63 = sphi 0, %s49
    %s67 = sphi 0, %s67
    %s69 = sphi 0, %s67
    %s70 = sphi 0, %s69
    %s84 = sphi 0, %s70
    %s88 = sphi 0, %s88
    %s90 = sphi 0, %s88
    %s91 = sphi 0, %s90
    %s105 = sphi 0, %s91
    %s111 = sphi 0, %s113
    %s114 = sphi 0, %s111
    %s115 = sphi 0, %s114
    %s131 = sphi 0, %s115
    %s137 = sphi 0, %s139
    %s140 = sphi 0, %s137
    %s141 = sphi 0, %s140
    %s157 = sphi 0, %s141
  $region4: #{res_block_forward.4} parent=0 // loop_header_branch
    %15 = sbr.rel (%p13) target = $region8
  $region5: #{res_block_forward.4} parent=0 // loop_body
    %s17 = ssub.s32 %s12, 1
    %s18 = ssub.s32 %s12, 2
    %s19 = sadd.s32 %s12, 1
    %s20 = ssub.s32 %s12, %s19
    %p21 = scmp.eq.s32.totalorder %s20, 0
    %s23 = sadd.s32 %s22, 1
    %s24 = scalar_select %p21, %s22, %s23
    %p27 = pneg %p21
    %p28 = scmp.eq.s32.totalorder %s12, 1
    %p29 = por %p27, %p28
    %p30 = scmp.ne.s32.totalorder %s22, %s25
    %p31 = scmp.eq.s32.totalorder %s12, 0
    %p32 = por %p30, %p31
    %p33 = scmp.ne.s32.totalorder %s22, %s25
    %p34 = scmp.eq.s32.totalorder %s17, 1
    %p35 = por %p33, %p34
    %p36 = scmp.ne.s32.totalorder %s25, %s26
    %p37 = scmp.eq.s32.totalorder %s17, 0
    %p38 = por %p36, %p37
    %p39 = scmp.ne.s32.totalorder %s25, %s26
    %p40 = scmp.eq.s32.totalorder %s18, 1
    %p41 = por %p39, %p40
    %p43 = scmp.ne.s32.totalorder %s26, %s42
    %p44 = scmp.eq.s32.totalorder %s18, 0
    %p45 = por %p43, %p44
    %s47 = sadd.s32 %s46, 1
    %p50 = scmp.eq.s32.totalorder %s12, 1
    %p51 = scmp.ne.s32.totalorder %s46, %s48
    %p52 = scmp.eq.s32.totalorder %s12, 0
    %p53 = por %p51, %p52
    %p54 = scmp.ne.s32.totalorder %s46, %s48
    %p55 = scmp.eq.s32.totalorder %s17, 1
    %p56 = por %p54, %p55
    %p57 = scmp.ne.s32.totalorder %s48, %s49
    %p58 = scmp.eq.s32.totalorder %s17, 0
    %p59 = por %p57, %p58
    %p60 = scmp.ne.s32.totalorder %s48, %s49
    %p61 = scmp.eq.s32.totalorder %s18, 1
    %p62 = por %p60, %p61
    %p64 = scmp.ne.s32.totalorder %s49, %s63
    %p65 = scmp.eq.s32.totalorder %s18, 0
    %p66 = por %p64, %p65
    %s68 = sadd.s32 %s67, 1
    %p71 = scmp.eq.s32.totalorder %s12, 1
    %p72 = scmp.ne.s32.totalorder %s67, %s69
    %p73 = scmp.eq.s32.totalorder %s12, 0
    %p74 = por %p72, %p73
    %p75 = scmp.ne.s32.totalorder %s67, %s69
    %p76 = scmp.eq.s32.totalorder %s17, 1
    %p77 = por %p75, %p76
    %p78 = scmp.ne.s32.totalorder %s69, %s70
    %p79 = scmp.eq.s32.totalorder %s17, 0
    %p80 = por %p78, %p79
    %p81 = scmp.ne.s32.totalorder %s69, %s70
    %p82 = scmp.eq.s32.totalorder %s18, 1
    %p83 = por %p81, %p82
    %p85 = scmp.ne.s32.totalorder %s70, %s84
    %p86 = scmp.eq.s32.totalorder %s18, 0
    %p87 = por %p85, %p86
    %s89 = sadd.s32 %s88, 1
    %p92 = scmp.eq.s32.totalorder %s12, 1
    %p93 = scmp.ne.s32.totalorder %s88, %s90
    %p94 = scmp.eq.s32.totalorder %s12, 0
    %p95 = por %p93, %p94
    %p96 = scmp.ne.s32.totalorder %s88, %s90
    %p97 = scmp.eq.s32.totalorder %s17, 1
    %p98 = por %p96, %p97
    %p99 = scmp.ne.s32.totalorder %s90, %s91
    %p100 = scmp.eq.s32.totalorder %s17, 0
    %p101 = por %p99, %p100
    %p102 = scmp.ne.s32.totalorder %s90, %s91
    %p103 = scmp.eq.s32.totalorder %s18, 1
    %p104 = por %p102, %p103
    %p106 = scmp.ne.s32.totalorder %s91, %s105
    %p107 = scmp.eq.s32.totalorder %s18, 0
    %p108 = por %p106, %p107
    %s109 = ssub.s32 %s12, %s19
    %p110 = scmp.eq.s32.totalorder %s109, 0
    %s112 = sadd.s32 %s111, 1
    %s113 = scalar_select %p110, %s111, %s112
    %p116 = pneg %p110
    %p117 = scmp.eq.s32.totalorder %s12, 1
    %p118 = por %p116, %p117
    %p119 = scmp.ne.s32.totalorder %s111, %s114
    %p120 = scmp.eq.s32.totalorder %s12, 0
    %p121 = por %p119, %p120
    %p122 = scmp.ne.s32.totalorder %s111, %s114
    %p123 = scmp.eq.s32.totalorder %s17, 1
    %p124 = por %p122, %p123
    %p125 = scmp.ne.s32.totalorder %s114, %s115
    %p126 = scmp.eq.s32.totalorder %s17, 0
    %p127 = por %p125, %p126
    %p128 = scmp.ne.s32.totalorder %s114, %s115
    %p129 = scmp.eq.s32.totalorder %s18, 1
    %p130 = por %p128, %p129
    %p132 = scmp.ne.s32.totalorder %s115, %s131
    %p133 = scmp.eq.s32.totalorder %s18, 0
    %p134 = por %p132, %p133
    %s135 = ssub.s32 %s12, %s19
    %p136 = scmp.eq.s32.totalorder %s135, 0
    %s138 = sadd.s32 %s137, 1
    %s139 = scalar_select %p136, %s137, %s138
    %p142 = pneg %p136
    %p143 = scmp.eq.s32.totalorder %s12, 1
    %p144 = por %p142, %p143
    %p145 = scmp.ne.s32.totalorder %s137, %s140
    %p146 = scmp.eq.s32.totalorder %s12, 0
    %p147 = por %p145, %p146
    %p148 = scmp.ne.s32.totalorder %s137, %s140
    %p149 = scmp.eq.s32.totalorder %s17, 1
    %p150 = por %p148, %p149
    %p151 = scmp.ne.s32.totalorder %s140, %s141
    %p152 = scmp.eq.s32.totalorder %s17, 0
    %p153 = por %p151, %p152
    %p154 = scmp.ne.s32.totalorder %s140, %s141
    %p155 = scmp.eq.s32.totalorder %s18, 1
    %p156 = por %p154, %p155
    %p158 = scmp.ne.s32.totalorder %s141, %s157
    %p159 = scmp.eq.s32.totalorder %s18, 0
    %p160 = por %p158, %p159
    %p161 = scmp.le.s32.totalorder 1, %s12
    %p162 = scmp.lt.s32.totalorder %s12, 3
    %p163 = pnand %p161, %p162
    %p164 = pneg %p163
    // Predicated region
    $region9: #{res_block_forward.4} parent=5 // pred_check
      _
    $region10: #{res_block_forward.4} parent=5 // pred_check_branch
      %166 = sbr.rel (%p163) target = $region12
    $region11: #{res_block_forward.4} parent=5 // pred_region
      %s167 = ssub.s32 %s12, 1
      // Predicated region
      $region13: #{res_block_forward.4} parent=11 // pred_check
        %p168 = pneg %p59
      $region14: #{res_block_forward.4} parent=11 // pred_check_branch
        %170 = sbr.rel (%p168) target = $region16
      $region15: #{res_block_forward.4} parent=11 // pred_region
        _
      $region16: #{res_block_forward.4} parent=11 // pred_fallthru
        _
      // Predicated region
      $region17: #{res_block_forward.4} parent=11 // pred_check
        %p171 = pneg %p80
      $region18: #{res_block_forward.4} parent=11 // pred_check_branch
        %173 = sbr.rel (%p171) target = $region20
      $region19: #{res_block_forward.4} parent=11 // pred_region
        _
      $region20: #{res_block_forward.4} parent=11 // pred_fallthru
        _
      // Predicated region
      $region21: #{res_block_forward.4} parent=11 // pred_check
        %p174 = pneg %p101
      $region22: #{res_block_forward.4} parent=11 // pred_check_branch
        %176 = sbr.rel (%p174) target = $region24
      $region23: #{res_block_forward.4} parent=11 // pred_region
        _
      $region24: #{res_block_forward.4} parent=11 // pred_fallthru
        _
    $region12: #{res_block_forward.4} parent=5 // pred_fallthru
      _
    %p177 = scmp.lt.s32.totalorder %s12, 2
    // Predicated region
    $region25: #{res_block_forward.4} parent=5 // pred_check
      %p178 = pneg %p177
    $region26: #{res_block_forward.4} parent=5 // pred_check_branch
      %180 = sbr.rel (%p178) target = $region28
    $region27: #{res_block_forward.4} parent=5 // pred_region
      // Predicated region
      $region29: #{res_block_forward.4} parent=27 // pred_check
        %p181 = pneg %p32
      $region30: #{res_block_forward.4} parent=27 // pred_check_branch
        %183 = sbr.rel (%p181) target = $region32
      $region31: #{res_block_forward.4} parent=27 // pred_region
        %p184 = scmp.lt.s32.totalorder %s12, 1
        %s185 = scalar_select %p184, %s12, 1
        %s186 = smul.addr %s185, 4
        %s187 = scalar_lea.vmem %s0, %s186
      $region32: #{res_block_forward.4} parent=27 // pred_fallthru
        _
    $region28: #{res_block_forward.4} parent=5 // pred_fallthru
      _
    %p188 = scmp.le.s32.totalorder 1, %s12
    %p189 = scmp.lt.s32.totalorder %s12, 3
    %p190 = pnand %p188, %p189
    %p191 = pneg %p190
    // Predicated region
    $region33: #{res_block_forward.4} parent=5 // pred_check
      _
    $region34: #{res_block_forward.4} parent=5 // pred_check_branch
      %193 = sbr.rel (%p190) target = $region36
    $region35: #{res_block_forward.4} parent=5 // pred_region
      %s194 = ssub.s32 %s12, 1
      %p195 = scmp.lt.s32.totalorder %s17, 1
      %s196 = scalar_select %p195, %s17, 1
      %s197 = smul.addr %s196, 4
      %s198 = scalar_lea.vmem %s0, %s197
      %p199 = pneg %p38
      %p200 = pneg %p35
      %p201 = pneg %p59
      %p202 = pneg %p56
      %p203 = pneg %p80
      %p204 = pneg %p77
      %p205 = pneg %p101
      %p206 = pneg %p98
      %p207 = pneg %p127
      %p208 = pneg %p124
      %p209 = scmp.lt.s32.totalorder %s17, 1
      %s210 = scalar_select %p209, %s17, 1
      %s211 = smul.addr %s210, 2
      %s212 = scalar_lea.vmem %s4, %s211
      %p213 = pneg %p153
      %p214 = pneg %p150
      %p215 = scmp.lt.s32.totalorder %s17, 1
      %s216 = scalar_select %p215, %s17, 1
      %s217 = smul.addr %s216, 2
      %s218 = scalar_lea.vmem %s5, %s217
      %p219 = scmp.lt.s32.totalorder %s17, 1
      %s220 = scalar_select %p219, %s17, 1
      %s221 = smul.addr %s220, 4
      %s222 = scalar_lea.vmem %s0, %s221
      %p223 = scmp.lt.s32.totalorder %s17, 1
      %s224 = scalar_select %p223, %s17, 1
      %s225 = smul.addr %s224, 2
      %s226 = scalar_lea.vmem %s4, %s225
      %p227 = scmp.lt.s32.totalorder %s17, 1
      %s228 = scalar_select %p227, %s17, 1
      %s229 = smul.addr %s228, 2
      %s230 = scalar_lea.vmem %s5, %s229
      %v232 = vld [vmem:[%s222] sm:$0xf]
      %v233 = vpack.c.bf16 %v232, %v232
      %v234 = vld [vmem:[%s1] sm:$0x3]
      %vm235 = vcmask 31744
      %v237 = vsel %vm235, %v234, 0
      %vm239 = vcmask 1041408
      %v241 = vsel %vm239, %v233, 0
      %243 = vmatprep.subr.bf16.mxu0 0
      %244 = vmatpush1.bf16.msra.mxu0 0
      %245 = vmatprep.subr.bf16.mxu0 0
      %246 = vmatpush1.bf16.msra.mxu0 0
      %247 = vmatprep.subr.bf16.mxu0 0
      %248 = vmatpush1.bf16.msra.mxu0 0
      %249 = vmatprep.subr.bf16.mxu0 0
      %250 = vmatpush1.bf16.msra.mxu0 0
      %251 = vmatprep.subr.bf16.mxu0 0
      %252 = vmatpush1.bf16.msra.mxu0 0
      %253 = vmatprep.subr.bf16.mxu0 0
      %254 = vmatpush1.bf16.msra.mxu0 0
      %255 = vmatprep.subr.bf16.mxu0 0
      %256 = vmatpush1.bf16.msra.mxu0 0
      %257 = vmatprep.subr.bf16.mxu0 0
      %258 = vmatpush1.bf16.msra.mxu0 %v241
      %259 = vmatprep.subr.bf16.mxu0 0
      %260 = vmatpush2.bf16.msra.mxu0 0
      %261 = vmatprep.subr.bf16.mxu0 0
      %262 = vmatpush2.bf16.msra.mxu0 0
      %263 = vmatprep.subr.bf16.mxu0 0
      %264 = vmatpush2.bf16.msra.mxu0 0
      %265 = vmatprep.subr.bf16.mxu0 0
      %266 = vmatpush2.bf16.msra.mxu0 0
      %267 = vmatprep.subr.bf16.mxu0 0
      %268 = vmatpush2.bf16.msra.mxu0 0
      %269 = vmatprep.subr.bf16.mxu0 0
      %270 = vmatpush2.bf16.msra.mxu0 0
      %271 = vmatprep.subr.bf16.mxu0 0
      %272 = vmatpush2.bf16.msra.mxu0 0
      %273 = vmatprep.subr.bf16.mxu0 0
      %274 = vmatpush2.bf16.msra.mxu0 0
      %275 = vmatprep.mubr.bf16.mxu0 0
      %276 = vmatmul.mubr.bf16.gmra.mxu0 %v237
      %v277 = vpop.f32.mrf.mxu0
      %v278 = vadd.f32 0.0, %v277
      %v279 = vpop.f32.mrf.mxu0
      %v280 = vpop.f32.mrf.mxu0
      %v281 = vpop.f32.mrf.mxu0
      %282 = vdwg.mxu0
      %s283 = scalar_lea.vmem %s1, 2
      %v284 = vld [vmem:[%s283] sm:$0x3]
      %v286 = vsel %vm235, %v284, 0
      %288 = vmatprep.subr.bf16.mxu0 0
      %289 = vmatpush1.bf16.msra.mxu0 0
      %290 = vmatprep.subr.bf16.mxu0 0
      %291 = vmatpush1.bf16.msra.mxu0 0
      %292 = vmatprep.subr.bf16.mxu0 0
      %293 = vmatpush1.bf16.msra.mxu0 0
      %294 = vmatprep.subr.bf16.mxu0 0
      %295 = vmatpush1.bf16.msra.mxu0 0
      %296 = vmatprep.subr.bf16.mxu0 0
      %297 = vmatpush1.bf16.msra.mxu0 0
      %298 = vmatprep.subr.bf16.mxu0 0
      %299 = vmatpush1.bf16.msra.mxu0 0
      %300 = vmatprep.subr.bf16.mxu0 0
      %301 = vmatpush1.bf16.msra.mxu0 0
      %302 = vmatprep.subr.bf16.mxu0 0
      %303 = vmatpush1.bf16.msra.mxu0 %v241
      %304 = vmatprep.subr.bf16.mxu0 0
      %305 = vmatpush2.bf16.msra.mxu0 0
      %306 = vmatprep.subr.bf16.mxu0 0
      %307 = vmatpush2.bf16.msra.mxu0 0
      %308 = vmatprep.subr.bf16.mxu0 0
      %309 = vmatpush2.bf16.msra.mxu0 0
      %310 = vmatprep.subr.bf16.mxu0 0
      %311 = vmatpush2.bf16.msra.mxu0 0
      %312 = vmatprep.subr.bf16.mxu0 0
      %313 = vmatpush2.bf16.msra.mxu0 0
      %314 = vmatprep.subr.bf16.mxu0 0
      %315 = vmatpush2.bf16.msra.mxu0 0
      %316 = vmatprep.subr.bf16.mxu0 0
      %317 = vmatpush2.bf16.msra.mxu0 0
      %318 = vmatprep.subr.bf16.mxu0 0
      %319 = vmatpush2.bf16.msra.mxu0 0
      %320 = vmatprep.mubr.bf16.mxu0 0
      %321 = vmatmul.mubr.bf16.gmra.mxu0 %v286
      %v322 = vpop.f32.mrf.mxu0
      %v323 = vadd.f32 0.0, %v322
      %v324 = vpop.f32.mrf.mxu0
      %v325 = vpop.f32.mrf.mxu0
      %v326 = vpop.f32.mrf.mxu0
      %327 = vdwg.mxu0
      %s328 = scalar_lea.vmem %s1, 4
      %v329 = vld [vmem:[%s328] sm:$0x3]
      %v331 = vsel %vm235, %v329, 0
      %333 = vmatprep.subr.bf16.mxu0 0
      %334 = vmatpush1.bf16.msra.mxu0 0
      %335 = vmatprep.subr.bf16.mxu0 0
      %336 = vmatpush1.bf16.msra.mxu0 0
      %337 = vmatprep.subr.bf16.mxu0 0
      %338 = vmatpush1.bf16.msra.mxu0 0
      %339 = vmatprep.subr.bf16.mxu0 0
      %340 = vmatpush1.bf16.msra.mxu0 0
      %341 = vmatprep.subr.bf16.mxu0 0
      %342 = vmatpush1.bf16.msra.mxu0 0
      %343 = vmatprep.subr.bf16.mxu0 0
      %344 = vmatpush1.bf16.msra.mxu0 0
      %345 = vmatprep.subr.bf16.mxu0 0
      %346 = vmatpush1.bf16.msra.mxu0 0
      %347 = vmatprep.subr.bf16.mxu0 0
      %348 = vmatpush1.bf16.msra.mxu0 %v241
      %349 = vmatprep.subr.bf16.mxu0 0
      %350 = vmatpush2.bf16.msra.mxu0 0
      %351 = vmatprep.subr.bf16.mxu0 0
      %352 = vmatpush2.bf16.msra.mxu0 0
      %353 = vmatprep.subr.bf16.mxu0 0
      %354 = vmatpush2.bf16.msra.mxu0 0
      %355 = vmatprep.subr.bf16.mxu0 0
      %356 = vmatpush2.bf16.msra.mxu0 0
      %357 = vmatprep.subr.bf16.mxu0 0
      %358 = vmatpush2.bf16.msra.mxu0 0
      %359 = vmatprep.subr.bf16.mxu0 0
      %360 = vmatpush2.bf16.msra.mxu0 0
      %361 = vmatprep.subr.bf16.mxu0 0
      %362 = vmatpush2.bf16.msra.mxu0 0
      %363 = vmatprep.subr.bf16.mxu0 0
      %364 = vmatpush2.bf16.msra.mxu0 0
      %365 = vmatprep.mubr.bf16.mxu0 0
      %366 = vmatmul.mubr.bf16.gmra.mxu0 %v331
      %v367 = vpop.f32.mrf.mxu0
      %v368 = vadd.f32 0.0, %v367
      %v369 = vpop.f32.mrf.mxu0
      %v370 = vpop.f32.mrf.mxu0
      %v371 = vpop.f32.mrf.mxu0
      %372 = vdwg.mxu0
      %374 = vrot.lane.b32.xlu0 %v278, 1
      %v375 = vpop.permute.xlu0 %374
      %vm377 = vcmask 7168
      %v378 = vsel %vm377, 0.0, %v375
      %v379 = vadd.f32 %v378, %v323
      %381 = vrot.lane.b32.xlu0 %v368, 127
      %v382 = vpop.permute.xlu0 %381
      %vm384 = vcmask 121856
      %v385 = vsel %vm384, %v382, 0.0
      %v386 = vadd.f32 %v379, %v385
      %v387 = vld [vmem:[%s3] sm:$0xf]
      %389 = vset.pattern.permute.xlu0 0
      %390 = vperm.xlu0 %389, %v387
      %v391 = vpop.permute.xlu0 %390
      %v393 = vmul.f32 %v386, %v391
      %s394 = scalar_lea.vmem %s3, 4
      %v395 = vld [vmem:[%s394] sm:$0xf]
      %397 = vset.pattern.permute.xlu0 0
      %398 = vperm.xlu0 %397, %v395
      %v399 = vpop.permute.xlu0 %398
      %v401 = vadd.f32 %v393, %v399
      %v402 = vmax.f32 %v401, 0.0
      %v403 = vpack.c.bf16 %v402, %v402
      %v404 = vld [vmem:[%s2] sm:$0x3]
      %v406 = vsel %vm235, %v404, 0
      %v409 = vsel %vm239, %v403, 0
      %411 = vmatprep.subr.bf16.mxu0 0
      %412 = vmatpush1.bf16.msra.mxu0 0
      %413 = vmatprep.subr.bf16.mxu0 0
      %414 = vmatpush1.bf16.msra.mxu0 0
      %415 = vmatprep.subr.bf16.mxu0 0
      %416 = vmatpush1.bf16.msra.mxu0 0
      %417 = vmatprep.subr.bf16.mxu0 0
      %418 = vmatpush1.bf16.msra.mxu0 0
      %419 = vmatprep.subr.bf16.mxu0 0
      %420 = vmatpush1.bf16.msra.mxu0 0
      %421 = vmatprep.subr.bf16.mxu0 0
      %422 = vmatpush1.bf16.msra.mxu0 0
      %423 = vmatprep.subr.bf16.mxu0 0
      %424 = vmatpush1.bf16.msra.mxu0 0
      %425 = vmatprep.subr.bf16.mxu0 0
      %426 = vmatpush1.bf16.msra.mxu0 %v409
      %427 = vmatprep.subr.bf16.mxu0 0
      %428 = vmatpush2.bf16.msra.mxu0 0
      %429 = vmatprep.subr.bf16.mxu0 0
      %430 = vmatpush2.bf16.msra.mxu0 0
      %431 = vmatprep.subr.bf16.mxu0 0
      %432 = vmatpush2.bf16.msra.mxu0 0
      %433 = vmatprep.subr.bf16.mxu0 0
      %434 = vmatpush2.bf16.msra.mxu0 0
      %435 = vmatprep.subr.bf16.mxu0 0
      %436 = vmatpush2.bf16.msra.mxu0 0
      %437 = vmatprep.subr.bf16.mxu0 0
      %438 = vmatpush2.bf16.msra.mxu0 0
      %439 = vmatprep.subr.bf16.mxu0 0
      %440 = vmatpush2.bf16.msra.mxu0 0
      %441 = vmatprep.subr.bf16.mxu0 0
      %442 = vmatpush2.bf16.msra.mxu0 0
      %443 = vmatprep.mubr.bf16.mxu0 0
      %444 = vmatmul.mubr.bf16.gmra.mxu0 %v406
      %v445 = vpop.f32.mrf.mxu0
      %v446 = vadd.f32 0.0, %v445
      %v447 = vpop.f32.mrf.mxu0
      %v448 = vpop.f32.mrf.mxu0
      %v449 = vpop.f32.mrf.mxu0
      %450 = vdwg.mxu0
      %s451 = scalar_lea.vmem %s2, 2
      %v452 = vld [vmem:[%s451] sm:$0x3]
      %v454 = vsel %vm235, %v452, 0
      %456 = vmatprep.subr.bf16.mxu0 0
      %457 = vmatpush1.bf16.msra.mxu0 0
      %458 = vmatprep.subr.bf16.mxu0 0
      %459 = vmatpush1.bf16.msra.mxu0 0
      %460 = vmatprep.subr.bf16.mxu0 0
      %461 = vmatpush1.bf16.msra.mxu0 0
      %462 = vmatprep.subr.bf16.mxu0 0
      %463 = vmatpush1.bf16.msra.mxu0 0
      %464 = vmatprep.subr.bf16.mxu0 0
      %465 = vmatpush1.bf16.msra.mxu0 0
      %466 = vmatprep.subr.bf16.mxu0 0
      %467 = vmatpush1.bf16.msra.mxu0 0
      %468 = vmatprep.subr.bf16.mxu0 0
      %469 = vmatpush1.bf16.msra.mxu0 0
      %470 = vmatprep.subr.bf16.mxu0 0
      %471 = vmatpush1.bf16.msra.mxu0 %v409
      %472 = vmatprep.subr.bf16.mxu0 0
      %473 = vmatpush2.bf16.msra.mxu0 0
      %474 = vmatprep.subr.bf16.mxu0 0
      %475 = vmatpush2.bf16.msra.mxu0 0
      %476 = vmatprep.subr.bf16.mxu0 0
      %477 = vmatpush2.bf16.msra.mxu0 0
      %478 = vmatprep.subr.bf16.mxu0 0
      %479 = vmatpush2.bf16.msra.mxu0 0
      %480 = vmatprep.subr.bf16.mxu0 0
      %481 = vmatpush2.bf16.msra.mxu0 0
      %482 = vmatprep.subr.bf16.mxu0 0
      %483 = vmatpush2.bf16.msra.mxu0 0
      %484 = vmatprep.subr.bf16.mxu0 0
      %485 = vmatpush2.bf16.msra.mxu0 0
      %486 = vmatprep.subr.bf16.mxu0 0
      %487 = vmatpush2.bf16.msra.mxu0 0
      %488 = vmatprep.mubr.bf16.mxu0 0
      %489 = vmatmul.mubr.bf16.gmra.mxu0 %v454
      %v490 = vpop.f32.mrf.mxu0
      %v491 = vadd.f32 0.0, %v490
      %v492 = vpop.f32.mrf.mxu0
      %v493 = vpop.f32.mrf.mxu0
      %v494 = vpop.f32.mrf.mxu0
      %495 = vdwg.mxu0
      %s496 = scalar_lea.vmem %s2, 4
      %v497 = vld [vmem:[%s496] sm:$0x3]
      %v499 = vsel %vm235, %v497, 0
      %501 = vmatprep.subr.bf16.mxu0 0
      %502 = vmatpush1.bf16.msra.mxu0 0
      %503 = vmatprep.subr.bf16.mxu0 0
      %504 = vmatpush1.bf16.msra.mxu0 0
      %505 = vmatprep.subr.bf16.mxu0 0
      %506 = vmatpush1.bf16.msra.mxu0 0
      %507 = vmatprep.subr.bf16.mxu0 0
      %508 = vmatpush1.bf16.msra.mxu0 0
      %509 = vmatprep.subr.bf16.mxu0 0
      %510 = vmatpush1.bf16.msra.mxu0 0
      %511 = vmatprep.subr.bf16.mxu0 0
      %512 = vmatpush1.bf16.msra.mxu0 0
      %513 = vmatprep.subr.bf16.mxu0 0
      %514 = vmatpush1.bf16.msra.mxu0 0
      %515 = vmatprep.subr.bf16.mxu0 0
      %516 = vmatpush1.bf16.msra.mxu0 %v409
      %517 = vmatprep.subr.bf16.mxu0 0
      %518 = vmatpush2.bf16.msra.mxu0 0
      %519 = vmatprep.subr.bf16.mxu0 0
      %520 = vmatpush2.bf16.msra.mxu0 0
      %521 = vmatprep.subr.bf16.mxu0 0
      %522 = vmatpush2.bf16.msra.mxu0 0
      %523 = vmatprep.subr.bf16.mxu0 0
      %524 = vmatpush2.bf16.msra.mxu0 0
      %525 = vmatprep.subr.bf16.mxu0 0
      %526 = vmatpush2.bf16.msra.mxu0 0
      %527 = vmatprep.subr.bf16.mxu0 0
      %528 = vmatpush2.bf16.msra.mxu0 0
      %529 = vmatprep.subr.bf16.mxu0 0
      %530 = vmatpush2.bf16.msra.mxu0 0
      %531 = vmatprep.subr.bf16.mxu0 0
      %532 = vmatpush2.bf16.msra.mxu0 0
      %533 = vmatprep.mubr.bf16.mxu0 0
      %534 = vmatmul.mubr.bf16.gmra.mxu0 %v499
      %v535 = vpop.f32.mrf.mxu0
      %v536 = vadd.f32 0.0, %v535
      %v537 = vpop.f32.mrf.mxu0
      %v538 = vpop.f32.mrf.mxu0
      %v539 = vpop.f32.mrf.mxu0
      %540 = vdwg.mxu0
      %542 = vrot.lane.b32.xlu0 %v446, 1
      %v543 = vpop.permute.xlu0 %542
      %v545 = vsel %vm377, 0.0, %v543
      %v546 = vadd.f32 %v545, %v491
      %548 = vrot.lane.b32.xlu0 %v536, 127
      %v549 = vpop.permute.xlu0 %548
      %v551 = vsel %vm384, %v549, 0.0
      %v552 = vadd.f32 %v546, %v551
      %v553 = vpack.c.bf16 %v552, %v552
      %vm554 = vcmask 123904
      %555 = vst.msk [vmem:[%s226] sm:$0x3] %vm554, %v553
      %vm556 = vcmask 125952
      %v557 = vsel %vm556, %v552, 0.0
      %558 = vadd.xlane.f32.xlu0 %v557
      %v559 = vpop.xlane.xlu0 %558
      %v560 = vmul.f32 %v552, %v552
      %v561 = vsel %vm556, %v560, 0.0
      %562 = vadd.xlane.f32.xlu0 %v561
      %v563 = vpop.xlane.xlu0 %562
      %v564 = vadd.f32 %v559, 0.0
      %v565 = vadd.f32 %v563, 0.0
      %v567 = vlaneseq
      %v568 = vand.u32 %v567, 127
      %v569 = vlaneseq
      %v570 = vshrl.u32 %v569, 7
      %v571 = vsub.s32 %v568, %v570
      %v572 = vrot.slane %v564, %v571
      %v575 = vlaneseq
      %v576 = vshrl.u32 %v575, 7
      %v577 = vsub.s32 %v568, %v576
      %v578 = vrot.slane %v565, %v577
      %vm580 = vcmask 1040384
      %v581 = vsel %vm580, %v572, %v578
      %vm582 = vcmask 25600
      %583 = vst.msk [vmem:[%s230] sm:$0x3] %vm582, %v581
      %p584 = scmp.lt.s32.totalorder %s17, 1
      %s585 = scalar_select %p584, %s17, 1
      %s586 = smul.addr %s585, 2
      %s587 = scalar_lea.vmem %s4, %s586
      %p588 = scmp.lt.s32.totalorder %s17, 1
      %s589 = scalar_select %p588, %s17, 1
      %s590 = smul.addr %s589, 2
      %s591 = scalar_lea.vmem %s5, %s590
      // Predicated region
      $region37: #{res_block_forward.4} parent=35 // pred_check
        %p592 = pneg %p124
      $region38: #{res_block_forward.4} parent=35 // pred_check_branch
        %594 = sbr.rel (%p592) target = $region40
      $region39: #{res_block_forward.4} parent=35 // pred_region
        _
      $region40: #{res_block_forward.4} parent=35 // pred_fallthru
        _
      // Predicated region
      $region41: #{res_block_forward.4} parent=35 // pred_check
        %p595 = pneg %p150
      $region42: #{res_block_forward.4} parent=35 // pred_check_branch
        %597 = sbr.rel (%p595) target = $region44
      $region43: #{res_block_forward.4} parent=35 // pred_region
        _
      $region44: #{res_block_forward.4} parent=35 // pred_fallthru
        _
    $region36: #{res_block_forward.4} parent=5 // pred_fallthru
      _
    %p598 = scmp.le.s32.totalorder 2, %s12
    // Predicated region
    $region45: #{res_block_forward.4} parent=5 // pred_check
      %p599 = pneg %p598
    $region46: #{res_block_forward.4} parent=5 // pred_check_branch
      %601 = sbr.rel (%p599) target = $region48
    $region47: #{res_block_forward.4} parent=5 // pred_region
      %s602 = ssub.s32 %s12, 2
      // Predicated region
      $region49: #{res_block_forward.4} parent=47 // pred_check
        %p603 = pneg %p130
      $region50: #{res_block_forward.4} parent=47 // pred_check_branch
        %605 = sbr.rel (%p603) target = $region52
      $region51: #{res_block_forward.4} parent=47 // pred_region
        %p606 = scmp.lt.s32.totalorder %s18, 1
        %s607 = scalar_select %p606, %s18, 1
        %s608 = smul.addr %s607, 2
        %s609 = scalar_lea.vmem %s4, %s608
      $region52: #{res_block_forward.4} parent=47 // pred_fallthru
        _
      // Predicated region
      $region53: #{res_block_forward.4} parent=47 // pred_check
        %p610 = pneg %p156
      $region54: #{res_block_forward.4} parent=47 // pred_check_branch
        %612 = sbr.rel (%p610) target = $region56
      $region55: #{res_block_forward.4} parent=47 // pred_region
        %p613 = scmp.lt.s32.totalorder %s18, 1
        %s614 = scalar_select %p613, %s18, 1
        %s615 = smul.addr %s614, 2
        %s616 = scalar_lea.vmem %s5, %s615
      $region56: #{res_block_forward.4} parent=47 // pred_fallthru
        _
    $region48: #{res_block_forward.4} parent=5 // pred_fallthru
      _
  $region6: #{res_block_forward.4} parent=0 // loop_footer
    %s16 = sadd.s32 1, %s12
  $region7: #{res_block_forward.4} parent=0 // loop_footer_branch
    %11 = sbr.rel target = $region3
  $region8: #{res_block_forward.4} parent=0 // loop_exit
    _

</llo_original>
